<compile_context>
chip_gen: v7x
topology: tpu7x:2x2x1
jax: 0.10.0
libtpu: 0.0.40
codegen_flags: <defaults>
</compile_context>

<pallas_src>
import jax
import jax.numpy as jnp
from jax import lax
from jax.experimental import pallas as pl
from jax.experimental.pallas import tpu as pltpu

BN_EPS = 1e-5


def conv_bn_relu_kernel(x_ref, w_ref, gamma_ref, beta_ref, o_ref):
    # x_ref     : [N, H, W]          f32, VMEM  (single input channel, squeezed)
    # w_ref     : [C_out * KH*KW]    f32, SMEM  (conv weights as scalars)
    # gamma_ref : [C_out]            f32, SMEM
    # beta_ref  : [C_out]            f32, SMEM
    # o_ref     : [N, C_out, OH, OW] f32, VMEM  (NCHW, written directly)
    n_batch, c_out, oh, ow = o_ref.shape
    kh = x_ref.shape[1] - oh + 1
    kw = x_ref.shape[2] - ow + 1
    kk = kh * kw
    m = jnp.float32(n_batch * oh * ow)

    # Fused im2col, tap-outer: one shifted tap tile live at a time, C_out
    # accumulators resident.  Pure VPU MACs (no MXU).
    accs = [None] * c_out
    for t in range(kk):
        i, j = t // kw, t % kw
        tap = x_ref[:, pl.ds(i, oh), pl.ds(j, ow)]        # [N, OH, OW]
        for c in range(c_out):
            term = w_ref[c * kk + t] * tap
            accs[c] = term if accs[c] is None else accs[c] + term

    # Per-channel BatchNorm (training-mode batch stats, one pass) + ReLU.
    for c in range(c_out):
        acc = accs[c]
        s1 = jnp.sum(acc)                 # two independent XLU reductions
        s2 = jnp.sum(acc * acc)
        mean = s1 / m
        var = s2 / m - mean * mean        # biased variance (PyTorch training)
        scale = gamma_ref[c] * lax.rsqrt(var + BN_EPS)
        shift = beta_ref[c] - mean * scale
        y = jnp.maximum(acc * scale + shift, 0.0).astype(o_ref.dtype)
        # Coalesced store: whole [N, OH, OW] channel slab in one statement.
        o_ref[:, c] = y


def conv_bn_relu(x, weight, gamma, beta):
    """x: [N, 1, H, W] (NCHW, like PyTorch). Returns [N, C_out, H-KH+1, W-KW+1]."""
    n, c_in, h, w = x.shape
    c_out, c_in_w, kh, kw = weight.shape
    assert c_in == 1 and c_in_w == 1, "module is Conv2d(1, 5, 3)"
    oh, ow = h - kh + 1, w - kw + 1

    # Pure metadata reshapes (contiguous squeeze / flatten) — no data movement.
    x3 = x.reshape(n, h, w).astype(jnp.float32)
    w_flat = weight.reshape(c_out * kh * kw).astype(jnp.float32)

    return pl.pallas_call(
        conv_bn_relu_kernel,
        out_shape=jax.ShapeDtypeStruct((n, c_out, oh, ow), jnp.float32),
        in_specs=[
            pl.BlockSpec(memory_space=pltpu.MemorySpace.VMEM),   # x
            pl.BlockSpec(memory_space=pltpu.MemorySpace.SMEM),   # conv weights
            pl.BlockSpec(memory_space=pltpu.MemorySpace.SMEM),   # bn gamma
            pl.BlockSpec(memory_space=pltpu.MemorySpace.SMEM),   # bn beta
        ],
        out_specs=pl.BlockSpec(memory_space=pltpu.MemorySpace.VMEM),
    )(x3, w_flat, gamma.astype(jnp.float32), beta.astype(jnp.float32))


def _reference(x, weight, gamma, beta):
    """Pure-JAX reference (conv -> training-mode BN -> ReLU), NCHW."""
    n, _, h, w = x.shape
    c_out, _, kh, kw = weight.shape
    oh, ow = h - kh + 1, w - kw + 1
    xs = x[:, 0].astype(jnp.float32)                              # [N, H, W]
    taps = jnp.stack([xs[:, i:i + oh, j:j + ow]
                      for i in range(kh) for j in range(kw)], 0)  # [KK, N, OH, OW]
    wf = weight.reshape(c_out, kh * kw).astype(jnp.float32)
    conv = jnp.tensordot(wf, taps, axes=([1], [0]))               # [C, N, OH, OW]
    mean = conv.mean(axis=(1, 2, 3), keepdims=True)
    var = ((conv - mean) ** 2).mean(axis=(1, 2, 3), keepdims=True)
    yh = gamma[:, None, None, None] * (conv - mean) * lax.rsqrt(var + BN_EPS) \
        + beta[:, None, None, None]
    return jnp.transpose(jnp.maximum(yh, 0.0), (1, 0, 2, 3))      # [N, C, OH, OW]


if __name__ == "__main__":
    key = jax.random.PRNGKey(0)
    kx, kw_key = jax.random.split(key, 2)

    # Module expects 1 input channel (Conv2d(1, 5, 3)); small shapes.
    N, C_IN, H, W = 2, 1, 16, 16
    C_OUT, KH, KW = 5, 3, 3

    x = jax.random.normal(kx, (N, C_IN, H, W), dtype=jnp.float32)

    # Deterministic parameter init (synthetic, not a checkpoint load).
    fan_in = C_IN * KH * KW
    bound = 1.0 / (fan_in ** 0.5)
    conv_w = jax.random.uniform(kw_key, (C_OUT, C_IN, KH, KW),
                                minval=-bound, maxval=bound, dtype=jnp.float32)
    # Conv bias is not materialised: exactly cancelled by BN training-mode mean.
    bn_gamma = jnp.ones((C_OUT,), jnp.float32)   # BatchNorm2d default weight
    bn_beta = jnp.zeros((C_OUT,), jnp.float32)   # BatchNorm2d default bias

    out = conv_bn_relu(x, conv_w, bn_gamma, bn_beta)
    jax.block_until_ready(out)

    assert out.shape == (N, C_OUT, H - 2, W - 2), out.shape

    ref = _reference(x, conv_w, bn_gamma, bn_beta)
    jax.block_until_ready(ref)
    assert jnp.allclose(out, ref, atol=1e-4, rtol=1e-3), "mismatch vs reference"

    print("KERNEL_OK")
</pallas_src>

<mosaic_0001>
module attributes {stable_mosaic.version = 11 : i64} {
  func.func @conv_bn_relu_kernel(%arg0: memref<2x16x16xf32, #tpu.memory_space<vmem>>, %arg1: memref<45xf32, #tpu.memory_space<smem>>, %arg2: memref<5xf32, #tpu.memory_space<smem>>, %arg3: memref<5xf32, #tpu.memory_space<smem>>, %arg4: memref<2x5x14x14xf32, #tpu.memory_space<vmem>>) attributes {dimension_semantics = [], scalar_prefetch = 0 : i64, scratch_operands = 0 : i64, tpu.core_type = #tpu.core_type<tc>} {
    %c0 = arith.constant 0 : index
    %c0_0 = arith.constant 0 : index
    %c0_1 = arith.constant 0 : index
    %0 = vector.load %arg0[%c0, %c0_0, %c0_1] : memref<2x16x16xf32, #tpu.memory_space<vmem>>, vector<2x14x14xf32>
    %c0_2 = arith.constant 0 : index
    %1 = memref.load %arg1[%c0_2] : memref<45xf32, #tpu.memory_space<smem>>
    %2 = vector.broadcast %1 : f32 to vector<2x14x14xf32>
    %3 = arith.mulf %2, %0 : vector<2x14x14xf32>
    %c9 = arith.constant 9 : index
    %4 = memref.load %arg1[%c9] : memref<45xf32, #tpu.memory_space<smem>>
    %5 = vector.broadcast %4 : f32 to vector<2x14x14xf32>
    %6 = arith.mulf %5, %0 : vector<2x14x14xf32>
    %c18 = arith.constant 18 : index
    %7 = memref.load %arg1[%c18] : memref<45xf32, #tpu.memory_space<smem>>
    %8 = vector.broadcast %7 : f32 to vector<2x14x14xf32>
    %9 = arith.mulf %8, %0 : vector<2x14x14xf32>
    %c27 = arith.constant 27 : index
    %10 = memref.load %arg1[%c27] : memref<45xf32, #tpu.memory_space<smem>>
    %11 = vector.broadcast %10 : f32 to vector<2x14x14xf32>
    %12 = arith.mulf %11, %0 : vector<2x14x14xf32>
    %c36 = arith.constant 36 : index
    %13 = memref.load %arg1[%c36] : memref<45xf32, #tpu.memory_space<smem>>
    %14 = vector.broadcast %13 : f32 to vector<2x14x14xf32>
    %15 = arith.mulf %14, %0 : vector<2x14x14xf32>
    %c0_3 = arith.constant 0 : index
    %c0_4 = arith.constant 0 : index
    %c1 = arith.constant 1 : index
    %16 = vector.load %arg0[%c0_3, %c0_4, %c1] : memref<2x16x16xf32, #tpu.memory_space<vmem>>, vector<2x14x14xf32>
    %c1_5 = arith.constant 1 : index
    %17 = memref.load %arg1[%c1_5] : memref<45xf32, #tpu.memory_space<smem>>
    %18 = vector.broadcast %17 : f32 to vector<2x14x14xf32>
    %19 = arith.mulf %18, %16 : vector<2x14x14xf32>
    %20 = arith.addf %3, %19 : vector<2x14x14xf32>
    %c10 = arith.constant 10 : index
    %21 = memref.load %arg1[%c10] : memref<45xf32, #tpu.memory_space<smem>>
    %22 = vector.broadcast %21 : f32 to vector<2x14x14xf32>
    %23 = arith.mulf %22, %16 : vector<2x14x14xf32>
    %24 = arith.addf %6, %23 : vector<2x14x14xf32>
    %c19 = arith.constant 19 : index
    %25 = memref.load %arg1[%c19] : memref<45xf32, #tpu.memory_space<smem>>
    %26 = vector.broadcast %25 : f32 to vector<2x14x14xf32>
    %27 = arith.mulf %26, %16 : vector<2x14x14xf32>
    %28 = arith.addf %9, %27 : vector<2x14x14xf32>
    %c28 = arith.constant 28 : index
    %29 = memref.load %arg1[%c28] : memref<45xf32, #tpu.memory_space<smem>>
    %30 = vector.broadcast %29 : f32 to vector<2x14x14xf32>
    %31 = arith.mulf %30, %16 : vector<2x14x14xf32>
    %32 = arith.addf %12, %31 : vector<2x14x14xf32>
    %c37 = arith.constant 37 : index
    %33 = memref.load %arg1[%c37] : memref<45xf32, #tpu.memory_space<smem>>
    %34 = vector.broadcast %33 : f32 to vector<2x14x14xf32>
    %35 = arith.mulf %34, %16 : vector<2x14x14xf32>
    %36 = arith.addf %15, %35 : vector<2x14x14xf32>
    %c0_6 = arith.constant 0 : index
    %c0_7 = arith.constant 0 : index
    %c2 = arith.constant 2 : index
    %37 = vector.load %arg0[%c0_6, %c0_7, %c2] : memref<2x16x16xf32, #tpu.memory_space<vmem>>, vector<2x14x14xf32>
    %c2_8 = arith.constant 2 : index
    %38 = memref.load %arg1[%c2_8] : memref<45xf32, #tpu.memory_space<smem>>
    %39 = vector.broadcast %38 : f32 to vector<2x14x14xf32>
    %40 = arith.mulf %39, %37 : vector<2x14x14xf32>
    %41 = arith.addf %20, %40 : vector<2x14x14xf32>
    %c11 = arith.constant 11 : index
    %42 = memref.load %arg1[%c11] : memref<45xf32, #tpu.memory_space<smem>>
    %43 = vector.broadcast %42 : f32 to vector<2x14x14xf32>
    %44 = arith.mulf %43, %37 : vector<2x14x14xf32>
    %45 = arith.addf %24, %44 : vector<2x14x14xf32>
    %c20 = arith.constant 20 : index
    %46 = memref.load %arg1[%c20] : memref<45xf32, #tpu.memory_space<smem>>
    %47 = vector.broadcast %46 : f32 to vector<2x14x14xf32>
    %48 = arith.mulf %47, %37 : vector<2x14x14xf32>
    %49 = arith.addf %28, %48 : vector<2x14x14xf32>
    %c29 = arith.constant 29 : index
    %50 = memref.load %arg1[%c29] : memref<45xf32, #tpu.memory_space<smem>>
    %51 = vector.broadcast %50 : f32 to vector<2x14x14xf32>
    %52 = arith.mulf %51, %37 : vector<2x14x14xf32>
    %53 = arith.addf %32, %52 : vector<2x14x14xf32>
    %c38 = arith.constant 38 : index
    %54 = memref.load %arg1[%c38] : memref<45xf32, #tpu.memory_space<smem>>
    %55 = vector.broadcast %54 : f32 to vector<2x14x14xf32>
    %56 = arith.mulf %55, %37 : vector<2x14x14xf32>
    %57 = arith.addf %36, %56 : vector<2x14x14xf32>
    %c0_9 = arith.constant 0 : index
    %c1_10 = arith.constant 1 : index
    %c0_11 = arith.constant 0 : index
    %58 = vector.load %arg0[%c0_9, %c1_10, %c0_11] : memref<2x16x16xf32, #tpu.memory_space<vmem>>, vector<2x14x14xf32>
    %c3 = arith.constant 3 : index
    %59 = memref.load %arg1[%c3] : memref<45xf32, #tpu.memory_space<smem>>
    %60 = vector.broadcast %59 : f32 to vector<2x14x14xf32>
    %61 = arith.mulf %60, %58 : vector<2x14x14xf32>
    %62 = arith.addf %41, %61 : vector<2x14x14xf32>
    %c12 = arith.constant 12 : index
    %63 = memref.load %arg1[%c12] : memref<45xf32, #tpu.memory_space<smem>>
    %64 = vector.broadcast %63 : f32 to vector<2x14x14xf32>
    %65 = arith.mulf %64, %58 : vector<2x14x14xf32>
    %66 = arith.addf %45, %65 : vector<2x14x14xf32>
    %c21 = arith.constant 21 : index
    %67 = memref.load %arg1[%c21] : memref<45xf32, #tpu.memory_space<smem>>
    %68 = vector.broadcast %67 : f32 to vector<2x14x14xf32>
    %69 = arith.mulf %68, %58 : vector<2x14x14xf32>
    %70 = arith.addf %49, %69 : vector<2x14x14xf32>
    %c30 = arith.constant 30 : index
    %71 = memref.load %arg1[%c30] : memref<45xf32, #tpu.memory_space<smem>>
    %72 = vector.broadcast %71 : f32 to vector<2x14x14xf32>
    %73 = arith.mulf %72, %58 : vector<2x14x14xf32>
    %74 = arith.addf %53, %73 : vector<2x14x14xf32>
    %c39 = arith.constant 39 : index
    %75 = memref.load %arg1[%c39] : memref<45xf32, #tpu.memory_space<smem>>
    %76 = vector.broadcast %75 : f32 to vector<2x14x14xf32>
    %77 = arith.mulf %76, %58 : vector<2x14x14xf32>
    %78 = arith.addf %57, %77 : vector<2x14x14xf32>
    %c0_12 = arith.constant 0 : index
    %c1_13 = arith.constant 1 : index
    %c1_14 = arith.constant 1 : index
    %79 = vector.load %arg0[%c0_12, %c1_13, %c1_14] : memref<2x16x16xf32, #tpu.memory_space<vmem>>, vector<2x14x14xf32>
    %c4 = arith.constant 4 : index
    %80 = memref.load %arg1[%c4] : memref<45xf32, #tpu.memory_space<smem>>
    %81 = vector.broadcast %80 : f32 to vector<2x14x14xf32>
    %82 = arith.mulf %81, %79 : vector<2x14x14xf32>
    %83 = arith.addf %62, %82 : vector<2x14x14xf32>
    %c13 = arith.constant 13 : index
    %84 = memref.load %arg1[%c13] : memref<45xf32, #tpu.memory_space<smem>>
    %85 = vector.broadcast %84 : f32 to vector<2x14x14xf32>
    %86 = arith.mulf %85, %79 : vector<2x14x14xf32>
    %87 = arith.addf %66, %86 : vector<2x14x14xf32>
    %c22 = arith.constant 22 : index
    %88 = memref.load %arg1[%c22] : memref<45xf32, #tpu.memory_space<smem>>
    %89 = vector.broadcast %88 : f32 to vector<2x14x14xf32>
    %90 = arith.mulf %89, %79 : vector<2x14x14xf32>
    %91 = arith.addf %70, %90 : vector<2x14x14xf32>
    %c31 = arith.constant 31 : index
    %92 = memref.load %arg1[%c31] : memref<45xf32, #tpu.memory_space<smem>>
    %93 = vector.broadcast %92 : f32 to vector<2x14x14xf32>
    %94 = arith.mulf %93, %79 : vector<2x14x14xf32>
    %95 = arith.addf %74, %94 : vector<2x14x14xf32>
    %c40 = arith.constant 40 : index
    %96 = memref.load %arg1[%c40] : memref<45xf32, #tpu.memory_space<smem>>
    %97 = vector.broadcast %96 : f32 to vector<2x14x14xf32>
    %98 = arith.mulf %97, %79 : vector<2x14x14xf32>
    %99 = arith.addf %78, %98 : vector<2x14x14xf32>
    %c0_15 = arith.constant 0 : index
    %c1_16 = arith.constant 1 : index
    %c2_17 = arith.constant 2 : index
    %100 = vector.load %arg0[%c0_15, %c1_16, %c2_17] : memref<2x16x16xf32, #tpu.memory_space<vmem>>, vector<2x14x14xf32>
    %c5 = arith.constant 5 : index
    %101 = memref.load %arg1[%c5] : memref<45xf32, #tpu.memory_space<smem>>
    %102 = vector.broadcast %101 : f32 to vector<2x14x14xf32>
    %103 = arith.mulf %102, %100 : vector<2x14x14xf32>
    %104 = arith.addf %83, %103 : vector<2x14x14xf32>
    %c14 = arith.constant 14 : index
    %105 = memref.load %arg1[%c14] : memref<45xf32, #tpu.memory_space<smem>>
    %106 = vector.broadcast %105 : f32 to vector<2x14x14xf32>
    %107 = arith.mulf %106, %100 : vector<2x14x14xf32>
    %108 = arith.addf %87, %107 : vector<2x14x14xf32>
    %c23 = arith.constant 23 : index
    %109 = memref.load %arg1[%c23] : memref<45xf32, #tpu.memory_space<smem>>
    %110 = vector.broadcast %109 : f32 to vector<2x14x14xf32>
    %111 = arith.mulf %110, %100 : vector<2x14x14xf32>
    %112 = arith.addf %91, %111 : vector<2x14x14xf32>
    %c32 = arith.constant 32 : index
    %113 = memref.load %arg1[%c32] : memref<45xf32, #tpu.memory_space<smem>>
    %114 = vector.broadcast %113 : f32 to vector<2x14x14xf32>
    %115 = arith.mulf %114, %100 : vector<2x14x14xf32>
    %116 = arith.addf %95, %115 : vector<2x14x14xf32>
    %c41 = arith.constant 41 : index
    %117 = memref.load %arg1[%c41] : memref<45xf32, #tpu.memory_space<smem>>
    %118 = vector.broadcast %117 : f32 to vector<2x14x14xf32>
    %119 = arith.mulf %118, %100 : vector<2x14x14xf32>
    %120 = arith.addf %99, %119 : vector<2x14x14xf32>
    %c0_18 = arith.constant 0 : index
    %c2_19 = arith.constant 2 : index
    %c0_20 = arith.constant 0 : index
    %121 = vector.load %arg0[%c0_18, %c2_19, %c0_20] : memref<2x16x16xf32, #tpu.memory_space<vmem>>, vector<2x14x14xf32>
    %c6 = arith.constant 6 : index
    %122 = memref.load %arg1[%c6] : memref<45xf32, #tpu.memory_space<smem>>
    %123 = vector.broadcast %122 : f32 to vector<2x14x14xf32>
    %124 = arith.mulf %123, %121 : vector<2x14x14xf32>
    %125 = arith.addf %104, %124 : vector<2x14x14xf32>
    %c15 = arith.constant 15 : index
    %126 = memref.load %arg1[%c15] : memref<45xf32, #tpu.memory_space<smem>>
    %127 = vector.broadcast %126 : f32 to vector<2x14x14xf32>
    %128 = arith.mulf %127, %121 : vector<2x14x14xf32>
    %129 = arith.addf %108, %128 : vector<2x14x14xf32>
    %c24 = arith.constant 24 : index
    %130 = memref.load %arg1[%c24] : memref<45xf32, #tpu.memory_space<smem>>
    %131 = vector.broadcast %130 : f32 to vector<2x14x14xf32>
    %132 = arith.mulf %131, %121 : vector<2x14x14xf32>
    %133 = arith.addf %112, %132 : vector<2x14x14xf32>
    %c33 = arith.constant 33 : index
    %134 = memref.load %arg1[%c33] : memref<45xf32, #tpu.memory_space<smem>>
    %135 = vector.broadcast %134 : f32 to vector<2x14x14xf32>
    %136 = arith.mulf %135, %121 : vector<2x14x14xf32>
    %137 = arith.addf %116, %136 : vector<2x14x14xf32>
    %c42 = arith.constant 42 : index
    %138 = memref.load %arg1[%c42] : memref<45xf32, #tpu.memory_space<smem>>
    %139 = vector.broadcast %138 : f32 to vector<2x14x14xf32>
    %140 = arith.mulf %139, %121 : vector<2x14x14xf32>
    %141 = arith.addf %120, %140 : vector<2x14x14xf32>
    %c0_21 = arith.constant 0 : index
    %c2_22 = arith.constant 2 : index
    %c1_23 = arith.constant 1 : index
    %142 = vector.load %arg0[%c0_21, %c2_22, %c1_23] : memref<2x16x16xf32, #tpu.memory_space<vmem>>, vector<2x14x14xf32>
    %c7 = arith.constant 7 : index
    %143 = memref.load %arg1[%c7] : memref<45xf32, #tpu.memory_space<smem>>
    %144 = vector.broadcast %143 : f32 to vector<2x14x14xf32>
    %145 = arith.mulf %144, %142 : vector<2x14x14xf32>
    %146 = arith.addf %125, %145 : vector<2x14x14xf32>
    %c16 = arith.constant 16 : index
    %147 = memref.load %arg1[%c16] : memref<45xf32, #tpu.memory_space<smem>>
    %148 = vector.broadcast %147 : f32 to vector<2x14x14xf32>
    %149 = arith.mulf %148, %142 : vector<2x14x14xf32>
    %150 = arith.addf %129, %149 : vector<2x14x14xf32>
    %c25 = arith.constant 25 : index
    %151 = memref.load %arg1[%c25] : memref<45xf32, #tpu.memory_space<smem>>
    %152 = vector.broadcast %151 : f32 to vector<2x14x14xf32>
    %153 = arith.mulf %152, %142 : vector<2x14x14xf32>
    %154 = arith.addf %133, %153 : vector<2x14x14xf32>
    %c34 = arith.constant 34 : index
    %155 = memref.load %arg1[%c34] : memref<45xf32, #tpu.memory_space<smem>>
    %156 = vector.broadcast %155 : f32 to vector<2x14x14xf32>
    %157 = arith.mulf %156, %142 : vector<2x14x14xf32>
    %158 = arith.addf %137, %157 : vector<2x14x14xf32>
    %c43 = arith.constant 43 : index
    %159 = memref.load %arg1[%c43] : memref<45xf32, #tpu.memory_space<smem>>
    %160 = vector.broadcast %159 : f32 to vector<2x14x14xf32>
    %161 = arith.mulf %160, %142 : vector<2x14x14xf32>
    %162 = arith.addf %141, %161 : vector<2x14x14xf32>
    %c0_24 = arith.constant 0 : index
    %c2_25 = arith.constant 2 : index
    %c2_26 = arith.constant 2 : index
    %163 = vector.load %arg0[%c0_24, %c2_25, %c2_26] : memref<2x16x16xf32, #tpu.memory_space<vmem>>, vector<2x14x14xf32>
    %c8 = arith.constant 8 : index
    %164 = memref.load %arg1[%c8] : memref<45xf32, #tpu.memory_space<smem>>
    %165 = vector.broadcast %164 : f32 to vector<2x14x14xf32>
    %166 = arith.mulf %165, %163 : vector<2x14x14xf32>
    %167 = arith.addf %146, %166 : vector<2x14x14xf32>
    %c17 = arith.constant 17 : index
    %168 = memref.load %arg1[%c17] : memref<45xf32, #tpu.memory_space<smem>>
    %169 = vector.broadcast %168 : f32 to vector<2x14x14xf32>
    %170 = arith.mulf %169, %163 : vector<2x14x14xf32>
    %171 = arith.addf %150, %170 : vector<2x14x14xf32>
    %c26 = arith.constant 26 : index
    %172 = memref.load %arg1[%c26] : memref<45xf32, #tpu.memory_space<smem>>
    %173 = vector.broadcast %172 : f32 to vector<2x14x14xf32>
    %174 = arith.mulf %173, %163 : vector<2x14x14xf32>
    %175 = arith.addf %154, %174 : vector<2x14x14xf32>
    %c35 = arith.constant 35 : index
    %176 = memref.load %arg1[%c35] : memref<45xf32, #tpu.memory_space<smem>>
    %177 = vector.broadcast %176 : f32 to vector<2x14x14xf32>
    %178 = arith.mulf %177, %163 : vector<2x14x14xf32>
    %179 = arith.addf %158, %178 : vector<2x14x14xf32>
    %c44 = arith.constant 44 : index
    %180 = memref.load %arg1[%c44] : memref<45xf32, #tpu.memory_space<smem>>
    %181 = vector.broadcast %180 : f32 to vector<2x14x14xf32>
    %182 = arith.mulf %181, %163 : vector<2x14x14xf32>
    %183 = arith.addf %162, %182 : vector<2x14x14xf32>
    %184 = vector.shape_cast %167 : vector<2x14x14xf32> to vector<1x2x14x14xf32>
    %cst = arith.constant dense<0.000000e+00> : vector<1xf32>
    %185 = vector.multi_reduction <add>, %184, %cst [1, 2, 3] : vector<1x2x14x14xf32> to vector<1xf32>
    %186 = vector.shape_cast %185 : vector<1xf32> to vector<1x1x1x1xf32>
    %187 = vector.extract %186[0, 0, 0, 0] : f32 from vector<1x1x1x1xf32>
    %188 = arith.mulf %167, %167 : vector<2x14x14xf32>
    %189 = vector.shape_cast %188 : vector<2x14x14xf32> to vector<1x2x14x14xf32>
    %cst_27 = arith.constant dense<0.000000e+00> : vector<1xf32>
    %190 = vector.multi_reduction <add>, %189, %cst_27 [1, 2, 3] : vector<1x2x14x14xf32> to vector<1xf32>
    %191 = vector.shape_cast %190 : vector<1xf32> to vector<1x1x1x1xf32>
    %192 = vector.extract %191[0, 0, 0, 0] : f32 from vector<1x1x1x1xf32>
    %cst_28 = arith.constant 3.920000e+02 : f32
    %193 = arith.divf %187, %cst_28 : f32
    %cst_29 = arith.constant 3.920000e+02 : f32
    %194 = arith.divf %192, %cst_29 : f32
    %195 = arith.mulf %193, %193 : f32
    %196 = arith.subf %194, %195 : f32
    %c0_30 = arith.constant 0 : index
    %197 = memref.load %arg2[%c0_30] : memref<5xf32, #tpu.memory_space<smem>>
    %cst_31 = arith.constant 9.99999974E-6 : f32
    %198 = arith.addf %196, %cst_31 : f32
    %199 = math.rsqrt %198 : f32
    %200 = arith.mulf %197, %199 : f32
    %c0_32 = arith.constant 0 : index
    %201 = memref.load %arg3[%c0_32] : memref<5xf32, #tpu.memory_space<smem>>
    %202 = arith.mulf %193, %200 : f32
    %203 = arith.subf %201, %202 : f32
    %204 = vector.broadcast %200 : f32 to vector<2x14x14xf32>
    %205 = arith.mulf %167, %204 : vector<2x14x14xf32>
    %206 = vector.broadcast %203 : f32 to vector<2x14x14xf32>
    %207 = arith.addf %205, %206 : vector<2x14x14xf32>
    %cst_33 = arith.constant 0.000000e+00 : f32
    %208 = vector.broadcast %cst_33 : f32 to vector<2x14x14xf32>
    %209 = arith.maximumf %207, %208 : vector<2x14x14xf32>
    %c0_34 = arith.constant 0 : index
    %c0_35 = arith.constant 0 : index
    %c0_36 = arith.constant 0 : index
    %c0_37 = arith.constant 0 : index
    %210 = vector.load %arg4[%c0_34, %c0_35, %c0_36, %c0_37] : memref<2x5x14x14xf32, #tpu.memory_space<vmem>>, vector<2x1x14x14xf32>
    %211 = vector.shape_cast %210 : vector<2x1x14x14xf32> to vector<2x14x14xf32>
    %212 = vector.shape_cast %209 : vector<2x14x14xf32> to vector<2x1x14x14xf32>
    tpu.vector_store %arg4[%c0_34, %c0_35, %c0_36, %c0_37], %212 {strides = array<i32>} : memref<2x5x14x14xf32, #tpu.memory_space<vmem>>, vector<2x1x14x14xf32>,
    %213 = vector.shape_cast %171 : vector<2x14x14xf32> to vector<1x2x14x14xf32>
    %cst_38 = arith.constant dense<0.000000e+00> : vector<1xf32>
    %214 = vector.multi_reduction <add>, %213, %cst_38 [1, 2, 3] : vector<1x2x14x14xf32> to vector<1xf32>
    %215 = vector.shape_cast %214 : vector<1xf32> to vector<1x1x1x1xf32>
    %216 = vector.extract %215[0, 0, 0, 0] : f32 from vector<1x1x1x1xf32>
    %217 = arith.mulf %171, %171 : vector<2x14x14xf32>
    %218 = vector.shape_cast %217 : vector<2x14x14xf32> to vector<1x2x14x14xf32>
    %cst_39 = arith.constant dense<0.000000e+00> : vector<1xf32>
    %219 = vector.multi_reduction <add>, %218, %cst_39 [1, 2, 3] : vector<1x2x14x14xf32> to vector<1xf32>
    %220 = vector.shape_cast %219 : vector<1xf32> to vector<1x1x1x1xf32>
    %221 = vector.extract %220[0, 0, 0, 0] : f32 from vector<1x1x1x1xf32>
    %cst_40 = arith.constant 3.920000e+02 : f32
    %222 = arith.divf %216, %cst_40 : f32
    %cst_41 = arith.constant 3.920000e+02 : f32
    %223 = arith.divf %221, %cst_41 : f32
    %224 = arith.mulf %222, %222 : f32
    %225 = arith.subf %223, %224 : f32
    %c1_42 = arith.constant 1 : index
    %226 = memref.load %arg2[%c1_42] : memref<5xf32, #tpu.memory_space<smem>>
    %cst_43 = arith.constant 9.99999974E-6 : f32
    %227 = arith.addf %225, %cst_43 : f32
    %228 = math.rsqrt %227 : f32
    %229 = arith.mulf %226, %228 : f32
    %c1_44 = arith.constant 1 : index
    %230 = memref.load %arg3[%c1_44] : memref<5xf32, #tpu.memory_space<smem>>
    %231 = arith.mulf %222, %229 : f32
    %232 = arith.subf %230, %231 : f32
    %233 = vector.broadcast %229 : f32 to vector<2x14x14xf32>
    %234 = arith.mulf %171, %233 : vector<2x14x14xf32>
    %235 = vector.broadcast %232 : f32 to vector<2x14x14xf32>
    %236 = arith.addf %234, %235 : vector<2x14x14xf32>
    %cst_45 = arith.constant 0.000000e+00 : f32
    %237 = vector.broadcast %cst_45 : f32 to vector<2x14x14xf32>
    %238 = arith.maximumf %236, %237 : vector<2x14x14xf32>
    %c0_46 = arith.constant 0 : index
    %c1_47 = arith.constant 1 : index
    %c0_48 = arith.constant 0 : index
    %c0_49 = arith.constant 0 : index
    %239 = vector.load %arg4[%c0_46, %c1_47, %c0_48, %c0_49] : memref<2x5x14x14xf32, #tpu.memory_space<vmem>>, vector<2x1x14x14xf32>
    %240 = vector.shape_cast %239 : vector<2x1x14x14xf32> to vector<2x14x14xf32>
    %241 = vector.shape_cast %238 : vector<2x14x14xf32> to vector<2x1x14x14xf32>
    tpu.vector_store %arg4[%c0_46, %c1_47, %c0_48, %c0_49], %241 {strides = array<i32>} : memref<2x5x14x14xf32, #tpu.memory_space<vmem>>, vector<2x1x14x14xf32>,
    %242 = vector.shape_cast %175 : vector<2x14x14xf32> to vector<1x2x14x14xf32>
    %cst_50 = arith.constant dense<0.000000e+00> : vector<1xf32>
    %243 = vector.multi_reduction <add>, %242, %cst_50 [1, 2, 3] : vector<1x2x14x14xf32> to vector<1xf32>
    %244 = vector.shape_cast %243 : vector<1xf32> to vector<1x1x1x1xf32>
    %245 = vector.extract %244[0, 0, 0, 0] : f32 from vector<1x1x1x1xf32>
    %246 = arith.mulf %175, %175 : vector<2x14x14xf32>
    %247 = vector.shape_cast %246 : vector<2x14x14xf32> to vector<1x2x14x14xf32>
    %cst_51 = arith.constant dense<0.000000e+00> : vector<1xf32>
    %248 = vector.multi_reduction <add>, %247, %cst_51 [1, 2, 3] : vector<1x2x14x14xf32> to vector<1xf32>
    %249 = vector.shape_cast %248 : vector<1xf32> to vector<1x1x1x1xf32>
    %250 = vector.extract %249[0, 0, 0, 0] : f32 from vector<1x1x1x1xf32>
    %cst_52 = arith.constant 3.920000e+02 : f32
    %251 = arith.divf %245, %cst_52 : f32
    %cst_53 = arith.constant 3.920000e+02 : f32
    %252 = arith.divf %250, %cst_53 : f32
    %253 = arith.mulf %251, %251 : f32
    %254 = arith.subf %252, %253 : f32
    %c2_54 = arith.constant 2 : index
    %255 = memref.load %arg2[%c2_54] : memref<5xf32, #tpu.memory_space<smem>>
    %cst_55 = arith.constant 9.99999974E-6 : f32
    %256 = arith.addf %254, %cst_55 : f32
    %257 = math.rsqrt %256 : f32
    %258 = arith.mulf %255, %257 : f32
    %c2_56 = arith.constant 2 : index
    %259 = memref.load %arg3[%c2_56] : memref<5xf32, #tpu.memory_space<smem>>
    %260 = arith.mulf %251, %258 : f32
    %261 = arith.subf %259, %260 : f32
    %262 = vector.broadcast %258 : f32 to vector<2x14x14xf32>
    %263 = arith.mulf %175, %262 : vector<2x14x14xf32>
    %264 = vector.broadcast %261 : f32 to vector<2x14x14xf32>
    %265 = arith.addf %263, %264 : vector<2x14x14xf32>
    %cst_57 = arith.constant 0.000000e+00 : f32
    %266 = vector.broadcast %cst_57 : f32 to vector<2x14x14xf32>
    %267 = arith.maximumf %265, %266 : vector<2x14x14xf32>
    %c0_58 = arith.constant 0 : index
    %c2_59 = arith.constant 2 : index
    %c0_60 = arith.constant 0 : index
    %c0_61 = arith.constant 0 : index
    %268 = vector.load %arg4[%c0_58, %c2_59, %c0_60, %c0_61] : memref<2x5x14x14xf32, #tpu.memory_space<vmem>>, vector<2x1x14x14xf32>
    %269 = vector.shape_cast %268 : vector<2x1x14x14xf32> to vector<2x14x14xf32>
    %270 = vector.shape_cast %267 : vector<2x14x14xf32> to vector<2x1x14x14xf32>
    tpu.vector_store %arg4[%c0_58, %c2_59, %c0_60, %c0_61], %270 {strides = array<i32>} : memref<2x5x14x14xf32, #tpu.memory_space<vmem>>, vector<2x1x14x14xf32>,
    %271 = vector.shape_cast %179 : vector<2x14x14xf32> to vector<1x2x14x14xf32>
    %cst_62 = arith.constant dense<0.000000e+00> : vector<1xf32>
    %272 = vector.multi_reduction <add>, %271, %cst_62 [1, 2, 3] : vector<1x2x14x14xf32> to vector<1xf32>
    %273 = vector.shape_cast %272 : vector<1xf32> to vector<1x1x1x1xf32>
    %274 = vector.extract %273[0, 0, 0, 0] : f32 from vector<1x1x1x1xf32>
    %275 = arith.mulf %179, %179 : vector<2x14x14xf32>
    %276 = vector.shape_cast %275 : vector<2x14x14xf32> to vector<1x2x14x14xf32>
    %cst_63 = arith.constant dense<0.000000e+00> : vector<1xf32>
    %277 = vector.multi_reduction <add>, %276, %cst_63 [1, 2, 3] : vector<1x2x14x14xf32> to vector<1xf32>
    %278 = vector.shape_cast %277 : vector<1xf32> to vector<1x1x1x1xf32>
    %279 = vector.extract %278[0, 0, 0, 0] : f32 from vector<1x1x1x1xf32>
    %cst_64 = arith.constant 3.920000e+02 : f32
    %280 = arith.divf %274, %cst_64 : f32
    %cst_65 = arith.constant 3.920000e+02 : f32
    %281 = arith.divf %279, %cst_65 : f32
    %282 = arith.mulf %280, %280 : f32
    %283 = arith.subf %281, %282 : f32
    %c3_66 = arith.constant 3 : index
    %284 = memref.load %arg2[%c3_66] : memref<5xf32, #tpu.memory_space<smem>>
    %cst_67 = arith.constant 9.99999974E-6 : f32
    %285 = arith.addf %283, %cst_67 : f32
    %286 = math.rsqrt %285 : f32
    %287 = arith.mulf %284, %286 : f32
    %c3_68 = arith.constant 3 : index
    %288 = memref.load %arg3[%c3_68] : memref<5xf32, #tpu.memory_space<smem>>
    %289 = arith.mulf %280, %287 : f32
    %290 = arith.subf %288, %289 : f32
    %291 = vector.broadcast %287 : f32 to vector<2x14x14xf32>
    %292 = arith.mulf %179, %291 : vector<2x14x14xf32>
    %293 = vector.broadcast %290 : f32 to vector<2x14x14xf32>
    %294 = arith.addf %292, %293 : vector<2x14x14xf32>
    %cst_69 = arith.constant 0.000000e+00 : f32
    %295 = vector.broadcast %cst_69 : f32 to vector<2x14x14xf32>
    %296 = arith.maximumf %294, %295 : vector<2x14x14xf32>
    %c0_70 = arith.constant 0 : index
    %c3_71 = arith.constant 3 : index
    %c0_72 = arith.constant 0 : index
    %c0_73 = arith.constant 0 : index
    %297 = vector.load %arg4[%c0_70, %c3_71, %c0_72, %c0_73] : memref<2x5x14x14xf32, #tpu.memory_space<vmem>>, vector<2x1x14x14xf32>
    %298 = vector.shape_cast %297 : vector<2x1x14x14xf32> to vector<2x14x14xf32>
    %299 = vector.shape_cast %296 : vector<2x14x14xf32> to vector<2x1x14x14xf32>
    tpu.vector_store %arg4[%c0_70, %c3_71, %c0_72, %c0_73], %299 {strides = array<i32>} : memref<2x5x14x14xf32, #tpu.memory_space<vmem>>, vector<2x1x14x14xf32>,
    %300 = vector.shape_cast %183 : vector<2x14x14xf32> to vector<1x2x14x14xf32>
    %cst_74 = arith.constant dense<0.000000e+00> : vector<1xf32>
    %301 = vector.multi_reduction <add>, %300, %cst_74 [1, 2, 3] : vector<1x2x14x14xf32> to vector<1xf32>
    %302 = vector.shape_cast %301 : vector<1xf32> to vector<1x1x1x1xf32>
    %303 = vector.extract %302[0, 0, 0, 0] : f32 from vector<1x1x1x1xf32>
    %304 = arith.mulf %183, %183 : vector<2x14x14xf32>
    %305 = vector.shape_cast %304 : vector<2x14x14xf32> to vector<1x2x14x14xf32>
    %cst_75 = arith.constant dense<0.000000e+00> : vector<1xf32>
    %306 = vector.multi_reduction <add>, %305, %cst_75 [1, 2, 3] : vector<1x2x14x14xf32> to vector<1xf32>
    %307 = vector.shape_cast %306 : vector<1xf32> to vector<1x1x1x1xf32>
    %308 = vector.extract %307[0, 0, 0, 0] : f32 from vector<1x1x1x1xf32>
    %cst_76 = arith.constant 3.920000e+02 : f32
    %309 = arith.divf %303, %cst_76 : f32
    %cst_77 = arith.constant 3.920000e+02 : f32
    %310 = arith.divf %308, %cst_77 : f32
    %311 = arith.mulf %309, %309 : f32
    %312 = arith.subf %310, %311 : f32
    %c4_78 = arith.constant 4 : index
    %313 = memref.load %arg2[%c4_78] : memref<5xf32, #tpu.memory_space<smem>>
    %cst_79 = arith.constant 9.99999974E-6 : f32
    %314 = arith.addf %312, %cst_79 : f32
    %315 = math.rsqrt %314 : f32
    %316 = arith.mulf %313, %315 : f32
    %c4_80 = arith.constant 4 : index
    %317 = memref.load %arg3[%c4_80] : memref<5xf32, #tpu.memory_space<smem>>
    %318 = arith.mulf %309, %316 : f32
    %319 = arith.subf %317, %318 : f32
    %320 = vector.broadcast %316 : f32 to vector<2x14x14xf32>
    %321 = arith.mulf %183, %320 : vector<2x14x14xf32>
    %322 = vector.broadcast %319 : f32 to vector<2x14x14xf32>
    %323 = arith.addf %321, %322 : vector<2x14x14xf32>
    %cst_81 = arith.constant 0.000000e+00 : f32
    %324 = vector.broadcast %cst_81 : f32 to vector<2x14x14xf32>
    %325 = arith.maximumf %323, %324 : vector<2x14x14xf32>
    %c0_82 = arith.constant 0 : index
    %c4_83 = arith.constant 4 : index
    %c0_84 = arith.constant 0 : index
    %c0_85 = arith.constant 0 : index
    %326 = vector.load %arg4[%c0_82, %c4_83, %c0_84, %c0_85] : memref<2x5x14x14xf32, #tpu.memory_space<vmem>>, vector<2x1x14x14xf32>
    %327 = vector.shape_cast %326 : vector<2x1x14x14xf32> to vector<2x14x14xf32>
    %328 = vector.shape_cast %325 : vector<2x14x14xf32> to vector<2x1x14x14xf32>
    tpu.vector_store %arg4[%c0_82, %c4_83, %c0_84, %c0_85], %328 {strides = array<i32>} : memref<2x5x14x14xf32, #tpu.memory_space<vmem>>, vector<2x1x14x14xf32>,
    return
  }
}

</mosaic_0001>

<llo_original>
// kernel: tpu_custom_call.1
$region0: #{tpu_custom_call.1}
  #allocation0 [shape = 'u32[]', space=smem, size = 0x4, offset = 0x4, fixed_abs, tag = 'smem constant byte address 0x4 - core index']
  #allocation1 [shape = 'u32[144,128]{1,0:T(1,128)}', space=vmem, size = 0x12000, scoped, tag = 'internal scratch']
  %s0 = inlined_call_operand.hbm [shape: f32[2,16,16], index: 0, kind: input, shape index: {}]
  %s1 = inlined_call_operand.vmem [shape: f32[45], index: 1, kind: input, shape index: {}]
  %s2 = inlined_call_operand.vmem [shape: f32[5], index: 2, kind: input, shape index: {}]
  %s3 = inlined_call_operand.vmem [shape: f32[5], index: 3, kind: input, shape index: {}]
  %s4 = inlined_call_operand.vmem [shape: f32[2,5,14,14], index: 4, kind: output, shape index: {}]
  %s5 = sld [smem:[#allocation0]]
  $region42: #{tpu_custom_call.1} parent=0
    _
  %s7 = ssub.s32 1, %s5
  %s8 = scalar_select 0, %s7, %s5
  $region1: #{tpu_custom_call.1} parent=0
    #allocation2 [shape = 'u8[16384]{0}', space=vmem, size = 0x4000, scoped, tag = 'input window, operand 0, single buffered']
    #allocation3 [shape = 's32[1]{0}', space=sflag, size = 0x4, scoped, tag = 'scoped memory for tpu_custom_call.1']
    #allocation4 [shape = 's32[1]{0}', space=sflag, size = 0x4, scoped, tag = 'scoped memory for tpu_custom_call.1']
    #allocation5 [shape = 'u8[512]{0}', space=smem, size = 0x200, scoped, tag = 'input window, operand 1, single buffered']
    #allocation6 [shape = 'u8[512]{0}', space=smem, size = 0x200, scoped, tag = 'input window, operand 2, single buffered']
    #allocation7 [shape = 's32[1]{0}', space=sflag, size = 0x4, scoped, tag = 'scoped memory for tpu_custom_call.1']
    #allocation8 [shape = 'u8[512]{0}', space=smem, size = 0x200, scoped, tag = 'input window, operand 3, single buffered']
    %9 = vsyncpa [#allocation3], 0
    %10 = vsyncpa [#allocation4], 0
    %11 = vsyncpa [#allocation7], 0
    // Predicated region
    $region2: #{tpu_custom_call.1} parent=1 // pred_check
      _
    $region3: #{tpu_custom_call.1} parent=1 // pred_check_branch
      %13 = sbr.rel (0) target = $region5
    $region4: #{tpu_custom_call.1} parent=1 // pred_region
      %s15 = ssub.s32 512, 512
      %16 = vsyncadd [#allocation3], %s15
      %s17 = sshll.u32 [#allocation2], 4
      %s18 = int_to_ptr.vmem [resolvable:$true] %s17
      %23 = dma.hbm_to_vmem [thread:$0]  %s0, 512, %s18, [#allocation3], 128, 128, 8
    $region5: #{tpu_custom_call.1} parent=1 // pred_fallthru
      _
    // Predicated region
    $region6: #{tpu_custom_call.1} parent=1 // pred_check
      _
    $region7: #{tpu_custom_call.1} parent=1 // pred_check_branch
      %25 = sbr.rel (0) target = $region9
    $region8: #{tpu_custom_call.1} parent=1 // pred_region
      %s27 = ssub.s32 16, 16
      %28 = vsyncadd [#allocation4], %s27
      %s30 = sshll.u32 %s1, 4
      %s31 = int_to_ptr.vmem [resolvable:$true] %s30
      %33 = dma.vmem_to_smem %s31, 16, [#allocation5], [#allocation4]
    $region9: #{tpu_custom_call.1} parent=1 // pred_fallthru
      _
    // Predicated region
    $region10: #{tpu_custom_call.1} parent=1 // pred_check
      _
    $region11: #{tpu_custom_call.1} parent=1 // pred_check_branch
      %35 = sbr.rel (0) target = $region13
    $region12: #{tpu_custom_call.1} parent=1 // pred_region
      %s37 = ssub.s32 16, 16
      %38 = vsyncadd [#allocation7], %s37
      %s40 = sshll.u32 %s2, 4
      %s41 = int_to_ptr.vmem [resolvable:$true] %s40
      %43 = dma.vmem_to_smem %s41, 16, [#allocation6], [#allocation7]
    $region13: #{tpu_custom_call.1} parent=1 // pred_fallthru
      _
    // Predicated region
    $region14: #{tpu_custom_call.1} parent=1 // pred_check
      _
    $region15: #{tpu_custom_call.1} parent=1 // pred_check_branch
      %45 = sbr.rel (0) target = $region17
    $region16: #{tpu_custom_call.1} parent=1 // pred_region
      %s47 = ssub.s32 16, 16
      %48 = vsyncadd [#allocation7], %s47
      %s50 = sshll.u32 %s3, 4
      %s51 = int_to_ptr.vmem [resolvable:$true] %s50
      %53 = dma.vmem_to_smem %s51, 16, [#allocation8], [#allocation7]
    $region17: #{tpu_custom_call.1} parent=1 // pred_fallthru
      _
    // Predicated region
    $region18: #{tpu_custom_call.1} parent=1 // pred_check
      _
    $region19: #{tpu_custom_call.1} parent=1 // pred_check_branch
      %55 = sbr.rel (0) target = $region21
    $region20: #{tpu_custom_call.1} parent=1 // pred_region
      %56 = dma.done [#allocation3], 512
    $region21: #{tpu_custom_call.1} parent=1 // pred_fallthru
      _
    // Predicated region
    $region22: #{tpu_custom_call.1} parent=1 // pred_check
      _
    $region23: #{tpu_custom_call.1} parent=1 // pred_check_branch
      %58 = sbr.rel (0) target = $region25
    $region24: #{tpu_custom_call.1} parent=1 // pred_region
      %59 = dma.done [#allocation4], 16
    $region25: #{tpu_custom_call.1} parent=1 // pred_fallthru
      _
    // Predicated region
    $region26: #{tpu_custom_call.1} parent=1 // pred_check
      _
    $region27: #{tpu_custom_call.1} parent=1 // pred_check_branch
      %61 = sbr.rel (0) target = $region29
    $region28: #{tpu_custom_call.1} parent=1 // pred_region
      %62 = dma.done [#allocation7], 16
    $region29: #{tpu_custom_call.1} parent=1 // pred_fallthru
      _
    // Predicated region
    $region30: #{tpu_custom_call.1} parent=1 // pred_check
      _
    $region31: #{tpu_custom_call.1} parent=1 // pred_check_branch
      %64 = sbr.rel (0) target = $region33
    $region32: #{tpu_custom_call.1} parent=1 // pred_region
      %65 = dma.done [#allocation7], 16
    $region33: #{tpu_custom_call.1} parent=1 // pred_fallthru
      _
    %66 = sfence
    %v67 = vld [vmem:[#allocation2] sm:$0xff]
    %v68 = vld [vmem:[#allocation2 + $0x8] sm:$0x3f]
    %v69 = vld [vmem:[#allocation2 + $0x10] sm:$0xff]
    %v70 = vld [vmem:[#allocation2 + $0x18] sm:$0x3f]
    %s71 = sld [smem:[#allocation5]]
    %v72 = vstv %s71
    %v73 = vmul.f32 %v72, %v67
    %v74 = vmul.f32 %v72, %v68
    %v75 = vmul.f32 %v72, %v69
    %v76 = vmul.f32 %v72, %v70
    %s77 = sld [smem:[#allocation5 + $0x9]]
    %v78 = vstv %s77
    %v79 = vmul.f32 %v78, %v67
    %v80 = vmul.f32 %v78, %v68
    %v81 = vmul.f32 %v78, %v69
    %v82 = vmul.f32 %v78, %v70
    %s83 = sld [smem:[#allocation5 + $0x12]]
    %v84 = vstv %s83
    %v85 = vmul.f32 %v84, %v67
    %v86 = vmul.f32 %v84, %v68
    %v87 = vmul.f32 %v84, %v69
    %v88 = vmul.f32 %v84, %v70
    %s89 = sld [smem:[#allocation5 + $0x1b]]
    %v90 = vstv %s89
    %v91 = vmul.f32 %v90, %v67
    %v92 = vmul.f32 %v90, %v68
    %v93 = vmul.f32 %v90, %v69
    %v94 = vmul.f32 %v90, %v70
    %s95 = sld [smem:[#allocation5 + $0x24]]
    %v96 = vstv %s95
    %v97 = vmul.f32 %v96, %v67
    %v98 = vmul.f32 %v96, %v68
    %v99 = vmul.f32 %v96, %v69
    %v100 = vmul.f32 %v96, %v70
    %s101 = sld [smem:[#allocation5 + $0x1]]
    %v102 = vstv %s101
    %v103 = vmul.f32 %v102, %v67
    %v104 = vmul.f32 %v102, %v68
    %v105 = vmul.f32 %v102, %v69
    %v106 = vmul.f32 %v102, %v70
    %111 = vrot.lane.b32.xlu0 %v103, 127
    %v112 = vpop.permute.xlu0 %111
    %113 = vrot.lane.b32.xlu0 %v104, 127
    %v114 = vpop.permute.xlu0 %113
    %115 = vrot.lane.b32.xlu0 %v105, 127
    %v116 = vpop.permute.xlu0 %115
    %117 = vrot.lane.b32.xlu0 %v106, 127
    %v118 = vpop.permute.xlu0 %117
    %v123 = vadd.f32 %v73, %v112
    %v124 = vadd.f32 %v74, %v114
    %v125 = vadd.f32 %v75, %v116
    %v126 = vadd.f32 %v76, %v118
    %s127 = sld [smem:[#allocation5 + $0xa]]
    %v128 = vstv %s127
    %v129 = vmul.f32 %v128, %v67
    %v130 = vmul.f32 %v128, %v68
    %v131 = vmul.f32 %v128, %v69
    %v132 = vmul.f32 %v128, %v70
    %137 = vrot.lane.b32.xlu0 %v129, 127
    %v138 = vpop.permute.xlu0 %137
    %139 = vrot.lane.b32.xlu0 %v130, 127
    %v140 = vpop.permute.xlu0 %139
    %141 = vrot.lane.b32.xlu0 %v131, 127
    %v142 = vpop.permute.xlu0 %141
    %143 = vrot.lane.b32.xlu0 %v132, 127
    %v144 = vpop.permute.xlu0 %143
    %v149 = vadd.f32 %v79, %v138
    %v150 = vadd.f32 %v80, %v140
    %v151 = vadd.f32 %v81, %v142
    %v152 = vadd.f32 %v82, %v144
    %s153 = sld [smem:[#allocation5 + $0x13]]
    %v154 = vstv %s153
    %v155 = vmul.f32 %v154, %v67
    %v156 = vmul.f32 %v154, %v68
    %v157 = vmul.f32 %v154, %v69
    %v158 = vmul.f32 %v154, %v70
    %163 = vrot.lane.b32.xlu0 %v155, 127
    %v164 = vpop.permute.xlu0 %163
    %165 = vrot.lane.b32.xlu0 %v156, 127
    %v166 = vpop.permute.xlu0 %165
    %167 = vrot.lane.b32.xlu0 %v157, 127
    %v168 = vpop.permute.xlu0 %167
    %169 = vrot.lane.b32.xlu0 %v158, 127
    %v170 = vpop.permute.xlu0 %169
    %v175 = vadd.f32 %v85, %v164
    %v176 = vadd.f32 %v86, %v166
    %v177 = vadd.f32 %v87, %v168
    %v178 = vadd.f32 %v88, %v170
    %s179 = sld [smem:[#allocation5 + $0x1c]]
    %v180 = vstv %s179
    %v181 = vmul.f32 %v180, %v67
    %v182 = vmul.f32 %v180, %v68
    %v183 = vmul.f32 %v180, %v69
    %v184 = vmul.f32 %v180, %v70
    %189 = vrot.lane.b32.xlu0 %v181, 127
    %v190 = vpop.permute.xlu0 %189
    %191 = vrot.lane.b32.xlu0 %v182, 127
    %v192 = vpop.permute.xlu0 %191
    %193 = vrot.lane.b32.xlu0 %v183, 127
    %v194 = vpop.permute.xlu0 %193
    %195 = vrot.lane.b32.xlu0 %v184, 127
    %v196 = vpop.permute.xlu0 %195
    %v201 = vadd.f32 %v91, %v190
    %v202 = vadd.f32 %v92, %v192
    %v203 = vadd.f32 %v93, %v194
    %v204 = vadd.f32 %v94, %v196
    %s205 = sld [smem:[#allocation5 + $0x25]]
    %v206 = vstv %s205
    %v207 = vmul.f32 %v206, %v67
    %v208 = vmul.f32 %v206, %v68
    %v209 = vmul.f32 %v206, %v69
    %v210 = vmul.f32 %v206, %v70
    %215 = vrot.lane.b32.xlu0 %v207, 127
    %v216 = vpop.permute.xlu0 %215
    %217 = vrot.lane.b32.xlu0 %v208, 127
    %v218 = vpop.permute.xlu0 %217
    %219 = vrot.lane.b32.xlu0 %v209, 127
    %v220 = vpop.permute.xlu0 %219
    %221 = vrot.lane.b32.xlu0 %v210, 127
    %v222 = vpop.permute.xlu0 %221
    %v227 = vadd.f32 %v97, %v216
    %v228 = vadd.f32 %v98, %v218
    %v229 = vadd.f32 %v99, %v220
    %v230 = vadd.f32 %v100, %v222
    %s231 = sld [smem:[#allocation5 + $0x2]]
    %v232 = vstv %s231
    %v233 = vmul.f32 %v232, %v67
    %v234 = vmul.f32 %v232, %v68
    %v235 = vmul.f32 %v232, %v69
    %v236 = vmul.f32 %v232, %v70
    %241 = vrot.lane.b32.xlu0 %v233, 126
    %v242 = vpop.permute.xlu0 %241
    %243 = vrot.lane.b32.xlu0 %v234, 126
    %v244 = vpop.permute.xlu0 %243
    %245 = vrot.lane.b32.xlu0 %v235, 126
    %v246 = vpop.permute.xlu0 %245
    %247 = vrot.lane.b32.xlu0 %v236, 126
    %v248 = vpop.permute.xlu0 %247
    %v253 = vadd.f32 %v123, %v242
    %v254 = vadd.f32 %v124, %v244
    %v255 = vadd.f32 %v125, %v246
    %v256 = vadd.f32 %v126, %v248
    %s257 = sld [smem:[#allocation5 + $0xb]]
    %v258 = vstv %s257
    %v259 = vmul.f32 %v258, %v67
    %v260 = vmul.f32 %v258, %v68
    %v261 = vmul.f32 %v258, %v69
    %v262 = vmul.f32 %v258, %v70
    %267 = vrot.lane.b32.xlu0 %v259, 126
    %v268 = vpop.permute.xlu0 %267
    %269 = vrot.lane.b32.xlu0 %v260, 126
    %v270 = vpop.permute.xlu0 %269
    %271 = vrot.lane.b32.xlu0 %v261, 126
    %v272 = vpop.permute.xlu0 %271
    %273 = vrot.lane.b32.xlu0 %v262, 126
    %v274 = vpop.permute.xlu0 %273
    %v279 = vadd.f32 %v149, %v268
    %v280 = vadd.f32 %v150, %v270
    %v281 = vadd.f32 %v151, %v272
    %v282 = vadd.f32 %v152, %v274
    %s283 = sld [smem:[#allocation5 + $0x14]]
    %v284 = vstv %s283
    %v285 = vmul.f32 %v284, %v67
    %v286 = vmul.f32 %v284, %v68
    %v287 = vmul.f32 %v284, %v69
    %v288 = vmul.f32 %v284, %v70
    %293 = vrot.lane.b32.xlu0 %v285, 126
    %v294 = vpop.permute.xlu0 %293
    %295 = vrot.lane.b32.xlu0 %v286, 126
    %v296 = vpop.permute.xlu0 %295
    %297 = vrot.lane.b32.xlu0 %v287, 126
    %v298 = vpop.permute.xlu0 %297
    %299 = vrot.lane.b32.xlu0 %v288, 126
    %v300 = vpop.permute.xlu0 %299
    %v305 = vadd.f32 %v175, %v294
    %v306 = vadd.f32 %v176, %v296
    %v307 = vadd.f32 %v177, %v298
    %v308 = vadd.f32 %v178, %v300
    %s309 = sld [smem:[#allocation5 + $0x1d]]
    %v310 = vstv %s309
    %v311 = vmul.f32 %v310, %v67
    %v312 = vmul.f32 %v310, %v68
    %v313 = vmul.f32 %v310, %v69
    %v314 = vmul.f32 %v310, %v70
    %319 = vrot.lane.b32.xlu0 %v311, 126
    %v320 = vpop.permute.xlu0 %319
    %321 = vrot.lane.b32.xlu0 %v312, 126
    %v322 = vpop.permute.xlu0 %321
    %323 = vrot.lane.b32.xlu0 %v313, 126
    %v324 = vpop.permute.xlu0 %323
    %325 = vrot.lane.b32.xlu0 %v314, 126
    %v326 = vpop.permute.xlu0 %325
    %v331 = vadd.f32 %v201, %v320
    %v332 = vadd.f32 %v202, %v322
    %v333 = vadd.f32 %v203, %v324
    %v334 = vadd.f32 %v204, %v326
    %s335 = sld [smem:[#allocation5 + $0x26]]
    %v336 = vstv %s335
    %v337 = vmul.f32 %v336, %v67
    %v338 = vmul.f32 %v336, %v68
    %v339 = vmul.f32 %v336, %v69
    %v340 = vmul.f32 %v336, %v70
    %345 = vrot.lane.b32.xlu0 %v337, 126
    %v346 = vpop.permute.xlu0 %345
    %347 = vrot.lane.b32.xlu0 %v338, 126
    %v348 = vpop.permute.xlu0 %347
    %349 = vrot.lane.b32.xlu0 %v339, 126
    %v350 = vpop.permute.xlu0 %349
    %351 = vrot.lane.b32.xlu0 %v340, 126
    %v352 = vpop.permute.xlu0 %351
    %v357 = vadd.f32 %v227, %v346
    %v358 = vadd.f32 %v228, %v348
    %v359 = vadd.f32 %v229, %v350
    %v360 = vadd.f32 %v230, %v352
    %v361 = vld [vmem:[#allocation2 + $0x1] sm:$0xff]
    %v362 = vld [vmem:[#allocation2 + $0x9] sm:$0x3f]
    %v363 = vld [vmem:[#allocation2 + $0x11] sm:$0xff]
    %v364 = vld [vmem:[#allocation2 + $0x19] sm:$0x3f]
    %s365 = sld [smem:[#allocation5 + $0x3]]
    %v366 = vstv %s365
    %v367 = vmul.f32 %v366, %v361
    %v368 = vmul.f32 %v366, %v362
    %v369 = vmul.f32 %v366, %v363
    %v370 = vmul.f32 %v366, %v364
    %v371 = vadd.f32 %v253, %v367
    %v372 = vadd.f32 %v254, %v368
    %v373 = vadd.f32 %v255, %v369
    %v374 = vadd.f32 %v256, %v370
    %s375 = sld [smem:[#allocation5 + $0xc]]
    %v376 = vstv %s375
    %v377 = vmul.f32 %v376, %v361
    %v378 = vmul.f32 %v376, %v362
    %v379 = vmul.f32 %v376, %v363
    %v380 = vmul.f32 %v376, %v364
    %v381 = vadd.f32 %v279, %v377
    %v382 = vadd.f32 %v280, %v378
    %v383 = vadd.f32 %v281, %v379
    %v384 = vadd.f32 %v282, %v380
    %s385 = sld [smem:[#allocation5 + $0x15]]
    %v386 = vstv %s385
    %v387 = vmul.f32 %v386, %v361
    %v388 = vmul.f32 %v386, %v362
    %v389 = vmul.f32 %v386, %v363
    %v390 = vmul.f32 %v386, %v364
    %v391 = vadd.f32 %v305, %v387
    %v392 = vadd.f32 %v306, %v388
    %v393 = vadd.f32 %v307, %v389
    %v394 = vadd.f32 %v308, %v390
    %s395 = sld [smem:[#allocation5 + $0x1e]]
    %v396 = vstv %s395
    %v397 = vmul.f32 %v396, %v361
    %v398 = vmul.f32 %v396, %v362
    %v399 = vmul.f32 %v396, %v363
    %v400 = vmul.f32 %v396, %v364
    %v401 = vadd.f32 %v331, %v397
    %v402 = vadd.f32 %v332, %v398
    %v403 = vadd.f32 %v333, %v399
    %v404 = vadd.f32 %v334, %v400
    %s405 = sld [smem:[#allocation5 + $0x27]]
    %v406 = vstv %s405
    %v407 = vmul.f32 %v406, %v361
    %v408 = vmul.f32 %v406, %v362
    %v409 = vmul.f32 %v406, %v363
    %v410 = vmul.f32 %v406, %v364
    %v411 = vadd.f32 %v357, %v407
    %v412 = vadd.f32 %v358, %v408
    %v413 = vadd.f32 %v359, %v409
    %v414 = vadd.f32 %v360, %v410
    %s415 = sld [smem:[#allocation5 + $0x4]]
    %v416 = vstv %s415
    %v417 = vmul.f32 %v416, %v361
    %v418 = vmul.f32 %v416, %v362
    %v419 = vmul.f32 %v416, %v363
    %v420 = vmul.f32 %v416, %v364
    %425 = vrot.lane.b32.xlu0 %v417, 127
    %v426 = vpop.permute.xlu0 %425
    %427 = vrot.lane.b32.xlu0 %v418, 127
    %v428 = vpop.permute.xlu0 %427
    %429 = vrot.lane.b32.xlu0 %v419, 127
    %v430 = vpop.permute.xlu0 %429
    %431 = vrot.lane.b32.xlu0 %v420, 127
    %v432 = vpop.permute.xlu0 %431
    %v437 = vadd.f32 %v371, %v426
    %v438 = vadd.f32 %v372, %v428
    %v439 = vadd.f32 %v373, %v430
    %v440 = vadd.f32 %v374, %v432
    %s441 = sld [smem:[#allocation5 + $0xd]]
    %v442 = vstv %s441
    %v443 = vmul.f32 %v442, %v361
    %v444 = vmul.f32 %v442, %v362
    %v445 = vmul.f32 %v442, %v363
    %v446 = vmul.f32 %v442, %v364
    %451 = vrot.lane.b32.xlu0 %v443, 127
    %v452 = vpop.permute.xlu0 %451
    %453 = vrot.lane.b32.xlu0 %v444, 127
    %v454 = vpop.permute.xlu0 %453
    %455 = vrot.lane.b32.xlu0 %v445, 127
    %v456 = vpop.permute.xlu0 %455
    %457 = vrot.lane.b32.xlu0 %v446, 127
    %v458 = vpop.permute.xlu0 %457
    %v463 = vadd.f32 %v381, %v452
    %v464 = vadd.f32 %v382, %v454
    %v465 = vadd.f32 %v383, %v456
    %v466 = vadd.f32 %v384, %v458
    %s467 = sld [smem:[#allocation5 + $0x16]]
    %v468 = vstv %s467
    %v469 = vmul.f32 %v468, %v361
    %v470 = vmul.f32 %v468, %v362
    %v471 = vmul.f32 %v468, %v363
    %v472 = vmul.f32 %v468, %v364
    %477 = vrot.lane.b32.xlu0 %v469, 127
    %v478 = vpop.permute.xlu0 %477
    %479 = vrot.lane.b32.xlu0 %v470, 127
    %v480 = vpop.permute.xlu0 %479
    %481 = vrot.lane.b32.xlu0 %v471, 127
    %v482 = vpop.permute.xlu0 %481
    %483 = vrot.lane.b32.xlu0 %v472, 127
    %v484 = vpop.permute.xlu0 %483
    %v489 = vadd.f32 %v391, %v478
    %v490 = vadd.f32 %v392, %v480
    %v491 = vadd.f32 %v393, %v482
    %v492 = vadd.f32 %v394, %v484
    %s493 = sld [smem:[#allocation5 + $0x1f]]
    %v494 = vstv %s493
    %v495 = vmul.f32 %v494, %v361
    %v496 = vmul.f32 %v494, %v362
    %v497 = vmul.f32 %v494, %v363
    %v498 = vmul.f32 %v494, %v364
    %503 = vrot.lane.b32.xlu0 %v495, 127
    %v504 = vpop.permute.xlu0 %503
    %505 = vrot.lane.b32.xlu0 %v496, 127
    %v506 = vpop.permute.xlu0 %505
    %507 = vrot.lane.b32.xlu0 %v497, 127
    %v508 = vpop.permute.xlu0 %507
    %509 = vrot.lane.b32.xlu0 %v498, 127
    %v510 = vpop.permute.xlu0 %509
    %v515 = vadd.f32 %v401, %v504
    %v516 = vadd.f32 %v402, %v506
    %v517 = vadd.f32 %v403, %v508
    %v518 = vadd.f32 %v404, %v510
    %s519 = sld [smem:[#allocation5 + $0x28]]
    %v520 = vstv %s519
    %v521 = vmul.f32 %v520, %v361
    %v522 = vmul.f32 %v520, %v362
    %v523 = vmul.f32 %v520, %v363
    %v524 = vmul.f32 %v520, %v364
    %529 = vrot.lane.b32.xlu0 %v521, 127
    %v530 = vpop.permute.xlu0 %529
    %531 = vrot.lane.b32.xlu0 %v522, 127
    %v532 = vpop.permute.xlu0 %531
    %533 = vrot.lane.b32.xlu0 %v523, 127
    %v534 = vpop.permute.xlu0 %533
    %535 = vrot.lane.b32.xlu0 %v524, 127
    %v536 = vpop.permute.xlu0 %535
    %v541 = vadd.f32 %v411, %v530
    %v542 = vadd.f32 %v412, %v532
    %v543 = vadd.f32 %v413, %v534
    %v544 = vadd.f32 %v414, %v536
    %s545 = sld [smem:[#allocation5 + $0x5]]
    %v546 = vstv %s545
    %v547 = vmul.f32 %v546, %v361
    %v548 = vmul.f32 %v546, %v362
    %v549 = vmul.f32 %v546, %v363
    %v550 = vmul.f32 %v546, %v364
    %555 = vrot.lane.b32.xlu0 %v547, 126
    %v556 = vpop.permute.xlu0 %555
    %557 = vrot.lane.b32.xlu0 %v548, 126
    %v558 = vpop.permute.xlu0 %557
    %559 = vrot.lane.b32.xlu0 %v549, 126
    %v560 = vpop.permute.xlu0 %559
    %561 = vrot.lane.b32.xlu0 %v550, 126
    %v562 = vpop.permute.xlu0 %561
    %v567 = vadd.f32 %v437, %v556
    %v568 = vadd.f32 %v438, %v558
    %v569 = vadd.f32 %v439, %v560
    %v570 = vadd.f32 %v440, %v562
    %s571 = sld [smem:[#allocation5 + $0xe]]
    %v572 = vstv %s571
    %v573 = vmul.f32 %v572, %v361
    %v574 = vmul.f32 %v572, %v362
    %v575 = vmul.f32 %v572, %v363
    %v576 = vmul.f32 %v572, %v364
    %581 = vrot.lane.b32.xlu0 %v573, 126
    %v582 = vpop.permute.xlu0 %581
    %583 = vrot.lane.b32.xlu0 %v574, 126
    %v584 = vpop.permute.xlu0 %583
    %585 = vrot.lane.b32.xlu0 %v575, 126
    %v586 = vpop.permute.xlu0 %585
    %587 = vrot.lane.b32.xlu0 %v576, 126
    %v588 = vpop.permute.xlu0 %587
    %v593 = vadd.f32 %v463, %v582
    %v594 = vadd.f32 %v464, %v584
    %v595 = vadd.f32 %v465, %v586
    %v596 = vadd.f32 %v466, %v588
    %s597 = sld [smem:[#allocation5 + $0x17]]
    %v598 = vstv %s597
    %v599 = vmul.f32 %v598, %v361
    %v600 = vmul.f32 %v598, %v362
    %v601 = vmul.f32 %v598, %v363
    %v602 = vmul.f32 %v598, %v364
    %607 = vrot.lane.b32.xlu0 %v599, 126
    %v608 = vpop.permute.xlu0 %607
    %609 = vrot.lane.b32.xlu0 %v600, 126
    %v610 = vpop.permute.xlu0 %609
    %611 = vrot.lane.b32.xlu0 %v601, 126
    %v612 = vpop.permute.xlu0 %611
    %613 = vrot.lane.b32.xlu0 %v602, 126
    %v614 = vpop.permute.xlu0 %613
    %v619 = vadd.f32 %v489, %v608
    %v620 = vadd.f32 %v490, %v610
    %v621 = vadd.f32 %v491, %v612
    %v622 = vadd.f32 %v492, %v614
    %s623 = sld [smem:[#allocation5 + $0x20]]
    %v624 = vstv %s623
    %v625 = vmul.f32 %v624, %v361
    %v626 = vmul.f32 %v624, %v362
    %v627 = vmul.f32 %v624, %v363
    %v628 = vmul.f32 %v624, %v364
    %633 = vrot.lane.b32.xlu0 %v625, 126
    %v634 = vpop.permute.xlu0 %633
    %635 = vrot.lane.b32.xlu0 %v626, 126
    %v636 = vpop.permute.xlu0 %635
    %637 = vrot.lane.b32.xlu0 %v627, 126
    %v638 = vpop.permute.xlu0 %637
    %639 = vrot.lane.b32.xlu0 %v628, 126
    %v640 = vpop.permute.xlu0 %639
    %v645 = vadd.f32 %v515, %v634
    %v646 = vadd.f32 %v516, %v636
    %v647 = vadd.f32 %v517, %v638
    %v648 = vadd.f32 %v518, %v640
    %s649 = sld [smem:[#allocation5 + $0x29]]
    %v650 = vstv %s649
    %v651 = vmul.f32 %v650, %v361
    %v652 = vmul.f32 %v650, %v362
    %v653 = vmul.f32 %v650, %v363
    %v654 = vmul.f32 %v650, %v364
    %659 = vrot.lane.b32.xlu0 %v651, 126
    %v660 = vpop.permute.xlu0 %659
    %661 = vrot.lane.b32.xlu0 %v652, 126
    %v662 = vpop.permute.xlu0 %661
    %663 = vrot.lane.b32.xlu0 %v653, 126
    %v664 = vpop.permute.xlu0 %663
    %665 = vrot.lane.b32.xlu0 %v654, 126
    %v666 = vpop.permute.xlu0 %665
    %v671 = vadd.f32 %v541, %v660
    %v672 = vadd.f32 %v542, %v662
    %v673 = vadd.f32 %v543, %v664
    %v674 = vadd.f32 %v544, %v666
    %v675 = vld [vmem:[#allocation2 + $0x2] sm:$0xff]
    %v676 = vld [vmem:[#allocation2 + $0xa] sm:$0x3f]
    %v677 = vld [vmem:[#allocation2 + $0x12] sm:$0xff]
    %v678 = vld [vmem:[#allocation2 + $0x1a] sm:$0x3f]
    %s679 = sld [smem:[#allocation5 + $0x6]]
    %v680 = vstv %s679
    %v681 = vmul.f32 %v680, %v675
    %v682 = vmul.f32 %v680, %v676
    %v683 = vmul.f32 %v680, %v677
    %v684 = vmul.f32 %v680, %v678
    %v685 = vadd.f32 %v567, %v681
    %v686 = vadd.f32 %v568, %v682
    %v687 = vadd.f32 %v569, %v683
    %v688 = vadd.f32 %v570, %v684
    %s689 = sld [smem:[#allocation5 + $0xf]]
    %v690 = vstv %s689
    %v691 = vmul.f32 %v690, %v675
    %v692 = vmul.f32 %v690, %v676
    %v693 = vmul.f32 %v690, %v677
    %v694 = vmul.f32 %v690, %v678
    %v695 = vadd.f32 %v593, %v691
    %v696 = vadd.f32 %v594, %v692
    %v697 = vadd.f32 %v595, %v693
    %v698 = vadd.f32 %v596, %v694
    %s699 = sld [smem:[#allocation5 + $0x18]]
    %v700 = vstv %s699
    %v701 = vmul.f32 %v700, %v675
    %v702 = vmul.f32 %v700, %v676
    %v703 = vmul.f32 %v700, %v677
    %v704 = vmul.f32 %v700, %v678
    %v705 = vadd.f32 %v619, %v701
    %v706 = vadd.f32 %v620, %v702
    %v707 = vadd.f32 %v621, %v703
    %v708 = vadd.f32 %v622, %v704
    %s709 = sld [smem:[#allocation5 + $0x21]]
    %v710 = vstv %s709
    %v711 = vmul.f32 %v710, %v675
    %v712 = vmul.f32 %v710, %v676
    %v713 = vmul.f32 %v710, %v677
    %v714 = vmul.f32 %v710, %v678
    %v715 = vadd.f32 %v645, %v711
    %v716 = vadd.f32 %v646, %v712
    %v717 = vadd.f32 %v647, %v713
    %v718 = vadd.f32 %v648, %v714
    %s719 = sld [smem:[#allocation5 + $0x2a]]
    %v720 = vstv %s719
    %v721 = vmul.f32 %v720, %v675
    %v722 = vmul.f32 %v720, %v676
    %v723 = vmul.f32 %v720, %v677
    %v724 = vmul.f32 %v720, %v678
    %v725 = vadd.f32 %v671, %v721
    %v726 = vadd.f32 %v672, %v722
    %v727 = vadd.f32 %v673, %v723
    %v728 = vadd.f32 %v674, %v724
    %s729 = sld [smem:[#allocation5 + $0x7]]
    %v730 = vstv %s729
    %v731 = vmul.f32 %v730, %v675
    %v732 = vmul.f32 %v730, %v676
    %v733 = vmul.f32 %v730, %v677
    %v734 = vmul.f32 %v730, %v678
    %739 = vrot.lane.b32.xlu0 %v731, 127
    %v740 = vpop.permute.xlu0 %739
    %741 = vrot.lane.b32.xlu0 %v732, 127
    %v742 = vpop.permute.xlu0 %741
    %743 = vrot.lane.b32.xlu0 %v733, 127
    %v744 = vpop.permute.xlu0 %743
    %745 = vrot.lane.b32.xlu0 %v734, 127
    %v746 = vpop.permute.xlu0 %745
    %v751 = vadd.f32 %v685, %v740
    %v752 = vadd.f32 %v686, %v742
    %v753 = vadd.f32 %v687, %v744
    %v754 = vadd.f32 %v688, %v746
    %s755 = sld [smem:[#allocation5 + $0x10]]
    %v756 = vstv %s755
    %v757 = vmul.f32 %v756, %v675
    %v758 = vmul.f32 %v756, %v676
    %v759 = vmul.f32 %v756, %v677
    %v760 = vmul.f32 %v756, %v678
    %765 = vrot.lane.b32.xlu0 %v757, 127
    %v766 = vpop.permute.xlu0 %765
    %767 = vrot.lane.b32.xlu0 %v758, 127
    %v768 = vpop.permute.xlu0 %767
    %769 = vrot.lane.b32.xlu0 %v759, 127
    %v770 = vpop.permute.xlu0 %769
    %771 = vrot.lane.b32.xlu0 %v760, 127
    %v772 = vpop.permute.xlu0 %771
    %v777 = vadd.f32 %v695, %v766
    %v778 = vadd.f32 %v696, %v768
    %v779 = vadd.f32 %v697, %v770
    %v780 = vadd.f32 %v698, %v772
    %s781 = sld [smem:[#allocation5 + $0x19]]
    %v782 = vstv %s781
    %v783 = vmul.f32 %v782, %v675
    %v784 = vmul.f32 %v782, %v676
    %v785 = vmul.f32 %v782, %v677
    %v786 = vmul.f32 %v782, %v678
    %791 = vrot.lane.b32.xlu0 %v783, 127
    %v792 = vpop.permute.xlu0 %791
    %793 = vrot.lane.b32.xlu0 %v784, 127
    %v794 = vpop.permute.xlu0 %793
    %795 = vrot.lane.b32.xlu0 %v785, 127
    %v796 = vpop.permute.xlu0 %795
    %797 = vrot.lane.b32.xlu0 %v786, 127
    %v798 = vpop.permute.xlu0 %797
    %v803 = vadd.f32 %v705, %v792
    %v804 = vadd.f32 %v706, %v794
    %v805 = vadd.f32 %v707, %v796
    %v806 = vadd.f32 %v708, %v798
    %s807 = sld [smem:[#allocation5 + $0x22]]
    %v808 = vstv %s807
    %v809 = vmul.f32 %v808, %v675
    %v810 = vmul.f32 %v808, %v676
    %v811 = vmul.f32 %v808, %v677
    %v812 = vmul.f32 %v808, %v678
    %817 = vrot.lane.b32.xlu0 %v809, 127
    %v818 = vpop.permute.xlu0 %817
    %819 = vrot.lane.b32.xlu0 %v810, 127
    %v820 = vpop.permute.xlu0 %819
    %821 = vrot.lane.b32.xlu0 %v811, 127
    %v822 = vpop.permute.xlu0 %821
    %823 = vrot.lane.b32.xlu0 %v812, 127
    %v824 = vpop.permute.xlu0 %823
    %v829 = vadd.f32 %v715, %v818
    %v830 = vadd.f32 %v716, %v820
    %v831 = vadd.f32 %v717, %v822
    %v832 = vadd.f32 %v718, %v824
    %s833 = sld [smem:[#allocation5 + $0x2b]]
    %v834 = vstv %s833
    %v835 = vmul.f32 %v834, %v675
    %v836 = vmul.f32 %v834, %v676
    %v837 = vmul.f32 %v834, %v677
    %v838 = vmul.f32 %v834, %v678
    %843 = vrot.lane.b32.xlu0 %v835, 127
    %v844 = vpop.permute.xlu0 %843
    %845 = vrot.lane.b32.xlu0 %v836, 127
    %v846 = vpop.permute.xlu0 %845
    %847 = vrot.lane.b32.xlu0 %v837, 127
    %v848 = vpop.permute.xlu0 %847
    %849 = vrot.lane.b32.xlu0 %v838, 127
    %v850 = vpop.permute.xlu0 %849
    %v855 = vadd.f32 %v725, %v844
    %v856 = vadd.f32 %v726, %v846
    %v857 = vadd.f32 %v727, %v848
    %v858 = vadd.f32 %v728, %v850
    %s859 = sld [smem:[#allocation5 + $0x8]]
    %v860 = vstv %s859
    %v861 = vmul.f32 %v860, %v675
    %v862 = vmul.f32 %v860, %v676
    %v863 = vmul.f32 %v860, %v677
    %v864 = vmul.f32 %v860, %v678
    %869 = vrot.lane.b32.xlu0 %v861, 126
    %v870 = vpop.permute.xlu0 %869
    %871 = vrot.lane.b32.xlu0 %v862, 126
    %v872 = vpop.permute.xlu0 %871
    %873 = vrot.lane.b32.xlu0 %v863, 126
    %v874 = vpop.permute.xlu0 %873
    %875 = vrot.lane.b32.xlu0 %v864, 126
    %v876 = vpop.permute.xlu0 %875
    %v881 = vadd.f32 %v751, %v870
    %v882 = vadd.f32 %v752, %v872
    %v883 = vadd.f32 %v753, %v874
    %v884 = vadd.f32 %v754, %v876
    %s885 = sld [smem:[#allocation5 + $0x11]]
    %v886 = vstv %s885
    %v887 = vmul.f32 %v886, %v675
    %v888 = vmul.f32 %v886, %v676
    %v889 = vmul.f32 %v886, %v677
    %v890 = vmul.f32 %v886, %v678
    %895 = vrot.lane.b32.xlu0 %v887, 126
    %v896 = vpop.permute.xlu0 %895
    %897 = vrot.lane.b32.xlu0 %v888, 126
    %v898 = vpop.permute.xlu0 %897
    %899 = vrot.lane.b32.xlu0 %v889, 126
    %v900 = vpop.permute.xlu0 %899
    %901 = vrot.lane.b32.xlu0 %v890, 126
    %v902 = vpop.permute.xlu0 %901
    %v907 = vadd.f32 %v777, %v896
    %v908 = vadd.f32 %v778, %v898
    %v909 = vadd.f32 %v779, %v900
    %v910 = vadd.f32 %v780, %v902
    %s911 = sld [smem:[#allocation5 + $0x1a]]
    %v912 = vstv %s911
    %v913 = vmul.f32 %v912, %v675
    %v914 = vmul.f32 %v912, %v676
    %v915 = vmul.f32 %v912, %v677
    %v916 = vmul.f32 %v912, %v678
    %921 = vrot.lane.b32.xlu0 %v913, 126
    %v922 = vpop.permute.xlu0 %921
    %923 = vrot.lane.b32.xlu0 %v914, 126
    %v924 = vpop.permute.xlu0 %923
    %925 = vrot.lane.b32.xlu0 %v915, 126
    %v926 = vpop.permute.xlu0 %925
    %927 = vrot.lane.b32.xlu0 %v916, 126
    %v928 = vpop.permute.xlu0 %927
    %v933 = vadd.f32 %v803, %v922
    %v934 = vadd.f32 %v804, %v924
    %v935 = vadd.f32 %v805, %v926
    %v936 = vadd.f32 %v806, %v928
    %s937 = sld [smem:[#allocation5 + $0x23]]
    %v938 = vstv %s937
    %v939 = vmul.f32 %v938, %v675
    %v940 = vmul.f32 %v938, %v676
    %v941 = vmul.f32 %v938, %v677
    %v942 = vmul.f32 %v938, %v678
    %947 = vrot.lane.b32.xlu0 %v939, 126
    %v948 = vpop.permute.xlu0 %947
    %949 = vrot.lane.b32.xlu0 %v940, 126
    %v950 = vpop.permute.xlu0 %949
    %951 = vrot.lane.b32.xlu0 %v941, 126
    %v952 = vpop.permute.xlu0 %951
    %953 = vrot.lane.b32.xlu0 %v942, 126
    %v954 = vpop.permute.xlu0 %953
    %v959 = vadd.f32 %v829, %v948
    %v960 = vadd.f32 %v830, %v950
    %v961 = vadd.f32 %v831, %v952
    %v962 = vadd.f32 %v832, %v954
    %s963 = sld [smem:[#allocation5 + $0x2c]]
    %v964 = vstv %s963
    %v965 = vmul.f32 %v964, %v675
    %v966 = vmul.f32 %v964, %v676
    %v967 = vmul.f32 %v964, %v677
    %v968 = vmul.f32 %v964, %v678
    %973 = vrot.lane.b32.xlu0 %v965, 126
    %v974 = vpop.permute.xlu0 %973
    %975 = vrot.lane.b32.xlu0 %v966, 126
    %v976 = vpop.permute.xlu0 %975
    %977 = vrot.lane.b32.xlu0 %v967, 126
    %v978 = vpop.permute.xlu0 %977
    %979 = vrot.lane.b32.xlu0 %v968, 126
    %v980 = vpop.permute.xlu0 %979
    %v985 = vadd.f32 %v855, %v974
    %v986 = vadd.f32 %v856, %v976
    %v987 = vadd.f32 %v857, %v978
    %v988 = vadd.f32 %v858, %v980
    %vm989 = vcmask 113664
    %v990 = vsel %vm989, %v881, 0.0
    %vm991 = vcmask 111616
    %v992 = vsel %vm991, %v882, 0.0
    %v993 = vadd.f32 %v990, %v992
    %v994 = vsel %vm989, %v883, 0.0
    %v995 = vadd.f32 %v993, %v994
    %v996 = vsel %vm991, %v884, 0.0
    %v997 = vadd.f32 %v995, %v996
    %998 = vadd.xlane.f32.xlu0 %v997
    %v999 = vpop.xlane.xlu0 %998
    %v1000 = vrot.slane %v999, 4
    %v1001 = vadd.f32 %v999, %v1000
    %v1002 = vrot.slane %v1001, 2
    %v1003 = vadd.f32 %v1001, %v1002
    %v1004 = vrot.slane %v1003, 1
    %v1005 = vadd.f32 %v1003, %v1004
    %s1006 = vtos %v1005
    %v1007 = vmul.f32 %v881, %v881
    %v1008 = vmul.f32 %v882, %v882
    %v1009 = vmul.f32 %v883, %v883
    %v1010 = vmul.f32 %v884, %v884
    %v1011 = vsel %vm989, %v1007, 0.0
    %v1012 = vsel %vm991, %v1008, 0.0
    %v1013 = vadd.f32 %v1011, %v1012
    %v1014 = vsel %vm989, %v1009, 0.0
    %v1015 = vadd.f32 %v1013, %v1014
    %v1016 = vsel %vm991, %v1010, 0.0
    %v1017 = vadd.f32 %v1015, %v1016
    %1018 = vadd.xlane.f32.xlu0 %v1017
    %v1019 = vpop.xlane.xlu0 %1018
    %v1020 = vrot.slane %v1019, 4
    %v1021 = vadd.f32 %v1019, %v1020
    %v1022 = vrot.slane %v1021, 2
    %v1023 = vadd.f32 %v1021, %v1022
    %v1024 = vrot.slane %v1023, 1
    %v1025 = vadd.f32 %v1023, %v1024
    %s1026 = vtos %v1025
    %v1027 = vrcp.pop 392.0
    %s1028 = vtos %v1027
    %s1029 = smul.f32 %s1006, %s1028
    %v1030 = vrcp.pop 392.0
    %s1031 = vtos %v1030
    %s1032 = smul.f32 %s1026, %s1031
    %s1033 = smul.f32 %s1029, %s1029
    %s1034 = ssub.f32 %s1032, %s1033
    %s1035 = sld [smem:[#allocation6]]
    %s1036 = sadd.f32 %s1034, 1e-05
    %v1037 = vstv %s1036
    %v1038 = vrsqrt.pop %v1037
    %s1039 = vtos %v1038
    %s1040 = smul.f32 %s1035, %s1039
    %s1041 = sld [smem:[#allocation8]]
    %s1042 = smul.f32 %s1029, %s1040
    %s1043 = ssub.f32 %s1041, %s1042
    %v1044 = vstv %s1040
    %v1045 = vmul.f32 %v881, %v1044
    %v1046 = vmul.f32 %v882, %v1044
    %v1047 = vmul.f32 %v883, %v1044
    %v1048 = vmul.f32 %v884, %v1044
    %v1049 = vstv %s1043
    %v1050 = vadd.f32 %v1045, %v1049
    %v1051 = vadd.f32 %v1046, %v1049
    %v1052 = vadd.f32 %v1047, %v1049
    %v1053 = vadd.f32 %v1048, %v1049
    %v1054 = vmax.f32 %v1050, 0.0
    %v1055 = vmax.f32 %v1051, 0.0
    %v1056 = vmax.f32 %v1052, 0.0
    %v1057 = vmax.f32 %v1053, 0.0
    %1058 = vst.msk [vmem:[%s4] sm:$0xff] %vm989, %v1054
    %1059 = vst.msk [vmem:[%s4 + $0x8] sm:$0x3f] %vm991, %v1055
    %1060 = vst.msk [vmem:[%s4 + $0x50] sm:$0xff] %vm989, %v1056
    %1061 = vst.msk [vmem:[%s4 + $0x58] sm:$0x3f] %vm991, %v1057
    %v1062 = vsel %vm989, %v907, 0.0
    %v1063 = vsel %vm991, %v908, 0.0
    %v1064 = vadd.f32 %v1062, %v1063
    %v1065 = vsel %vm989, %v909, 0.0
    %v1066 = vadd.f32 %v1064, %v1065
    %v1067 = vsel %vm991, %v910, 0.0
    %v1068 = vadd.f32 %v1066, %v1067
    %1069 = vadd.xlane.f32.xlu0 %v1068
    %v1070 = vpop.xlane.xlu0 %1069
    %v1071 = vrot.slane %v1070, 4
    %v1072 = vadd.f32 %v1070, %v1071
    %v1073 = vrot.slane %v1072, 2
    %v1074 = vadd.f32 %v1072, %v1073
    %v1075 = vrot.slane %v1074, 1
    %v1076 = vadd.f32 %v1074, %v1075
    %s1077 = vtos %v1076
    %v1078 = vmul.f32 %v907, %v907
    %v1079 = vmul.f32 %v908, %v908
    %v1080 = vmul.f32 %v909, %v909
    %v1081 = vmul.f32 %v910, %v910
    %v1082 = vsel %vm989, %v1078, 0.0
    %v1083 = vsel %vm991, %v1079, 0.0
    %v1084 = vadd.f32 %v1082, %v1083
    %v1085 = vsel %vm989, %v1080, 0.0
    %v1086 = vadd.f32 %v1084, %v1085
    %v1087 = vsel %vm991, %v1081, 0.0
    %v1088 = vadd.f32 %v1086, %v1087
    %1089 = vadd.xlane.f32.xlu0 %v1088
    %v1090 = vpop.xlane.xlu0 %1089
    %v1091 = vrot.slane %v1090, 4
    %v1092 = vadd.f32 %v1090, %v1091
    %v1093 = vrot.slane %v1092, 2
    %v1094 = vadd.f32 %v1092, %v1093
    %v1095 = vrot.slane %v1094, 1
    %v1096 = vadd.f32 %v1094, %v1095
    %s1097 = vtos %v1096
    %v1098 = vrcp.pop 392.0
    %s1099 = vtos %v1098
    %s1100 = smul.f32 %s1077, %s1099
    %v1101 = vrcp.pop 392.0
    %s1102 = vtos %v1101
    %s1103 = smul.f32 %s1097, %s1102
    %s1104 = smul.f32 %s1100, %s1100
    %s1105 = ssub.f32 %s1103, %s1104
    %s1106 = sld [smem:[#allocation6 + $0x1]]
    %s1107 = sadd.f32 %s1105, 1e-05
    %v1108 = vstv %s1107
    %v1109 = vrsqrt.pop %v1108
    %s1110 = vtos %v1109
    %s1111 = smul.f32 %s1106, %s1110
    %s1112 = sld [smem:[#allocation8 + $0x1]]
    %s1113 = smul.f32 %s1100, %s1111
    %s1114 = ssub.f32 %s1112, %s1113
    %v1115 = vstv %s1111
    %v1116 = vmul.f32 %v907, %v1115
    %v1117 = vmul.f32 %v908, %v1115
    %v1118 = vmul.f32 %v909, %v1115
    %v1119 = vmul.f32 %v910, %v1115
    %v1120 = vstv %s1114
    %v1121 = vadd.f32 %v1116, %v1120
    %v1122 = vadd.f32 %v1117, %v1120
    %v1123 = vadd.f32 %v1118, %v1120
    %v1124 = vadd.f32 %v1119, %v1120
    %v1125 = vmax.f32 %v1121, 0.0
    %v1126 = vmax.f32 %v1122, 0.0
    %v1127 = vmax.f32 %v1123, 0.0
    %v1128 = vmax.f32 %v1124, 0.0
    %s1129 = scalar_lea.vmem %s4, 16
    %1130 = vst.msk [vmem:[%s1129] sm:$0xff] %vm989, %v1125
    %1131 = vst.msk [vmem:[%s1129 + $0x8] sm:$0x3f] %vm991, %v1126
    %1132 = vst.msk [vmem:[%s1129 + $0x50] sm:$0xff] %vm989, %v1127
    %1133 = vst.msk [vmem:[%s1129 + $0x58] sm:$0x3f] %vm991, %v1128
    %v1134 = vsel %vm989, %v933, 0.0
    %v1135 = vsel %vm991, %v934, 0.0
    %v1136 = vadd.f32 %v1134, %v1135
    %v1137 = vsel %vm989, %v935, 0.0
    %v1138 = vadd.f32 %v1136, %v1137
    %v1139 = vsel %vm991, %v936, 0.0
    %v1140 = vadd.f32 %v1138, %v1139
    %1141 = vadd.xlane.f32.xlu0 %v1140
    %v1142 = vpop.xlane.xlu0 %1141
    %v1143 = vrot.slane %v1142, 4
    %v1144 = vadd.f32 %v1142, %v1143
    %v1145 = vrot.slane %v1144, 2
    %v1146 = vadd.f32 %v1144, %v1145
    %v1147 = vrot.slane %v1146, 1
    %v1148 = vadd.f32 %v1146, %v1147
    %s1149 = vtos %v1148
    %v1150 = vmul.f32 %v933, %v933
    %v1151 = vmul.f32 %v934, %v934
    %v1152 = vmul.f32 %v935, %v935
    %v1153 = vmul.f32 %v936, %v936
    %v1154 = vsel %vm989, %v1150, 0.0
    %v1155 = vsel %vm991, %v1151, 0.0
    %v1156 = vadd.f32 %v1154, %v1155
    %v1157 = vsel %vm989, %v1152, 0.0
    %v1158 = vadd.f32 %v1156, %v1157
    %v1159 = vsel %vm991, %v1153, 0.0
    %v1160 = vadd.f32 %v1158, %v1159
    %1161 = vadd.xlane.f32.xlu0 %v1160
    %v1162 = vpop.xlane.xlu0 %1161
    %v1163 = vrot.slane %v1162, 4
    %v1164 = vadd.f32 %v1162, %v1163
    %v1165 = vrot.slane %v1164, 2
    %v1166 = vadd.f32 %v1164, %v1165
    %v1167 = vrot.slane %v1166, 1
    %v1168 = vadd.f32 %v1166, %v1167
    %s1169 = vtos %v1168
    %v1170 = vrcp.pop 392.0
    %s1171 = vtos %v1170
    %s1172 = smul.f32 %s1149, %s1171
    %v1173 = vrcp.pop 392.0
    %s1174 = vtos %v1173
    %s1175 = smul.f32 %s1169, %s1174
    %s1176 = smul.f32 %s1172, %s1172
    %s1177 = ssub.f32 %s1175, %s1176
    %s1178 = sld [smem:[#allocation6 + $0x2]]
    %s1179 = sadd.f32 %s1177, 1e-05
    %v1180 = vstv %s1179
    %v1181 = vrsqrt.pop %v1180
    %s1182 = vtos %v1181
    %s1183 = smul.f32 %s1178, %s1182
    %s1184 = sld [smem:[#allocation8 + $0x2]]
    %s1185 = smul.f32 %s1172, %s1183
    %s1186 = ssub.f32 %s1184, %s1185
    %v1187 = vstv %s1183
    %v1188 = vmul.f32 %v933, %v1187
    %v1189 = vmul.f32 %v934, %v1187
    %v1190 = vmul.f32 %v935, %v1187
    %v1191 = vmul.f32 %v936, %v1187
    %v1192 = vstv %s1186
    %v1193 = vadd.f32 %v1188, %v1192
    %v1194 = vadd.f32 %v1189, %v1192
    %v1195 = vadd.f32 %v1190, %v1192
    %v1196 = vadd.f32 %v1191, %v1192
    %v1197 = vmax.f32 %v1193, 0.0
    %v1198 = vmax.f32 %v1194, 0.0
    %v1199 = vmax.f32 %v1195, 0.0
    %v1200 = vmax.f32 %v1196, 0.0
    %s1201 = scalar_lea.vmem %s4, 32
    %1202 = vst.msk [vmem:[%s1201] sm:$0xff] %vm989, %v1197
    %1203 = vst.msk [vmem:[%s1201 + $0x8] sm:$0x3f] %vm991, %v1198
    %1204 = vst.msk [vmem:[%s1201 + $0x50] sm:$0xff] %vm989, %v1199
    %1205 = vst.msk [vmem:[%s1201 + $0x58] sm:$0x3f] %vm991, %v1200
    %v1206 = vsel %vm989, %v959, 0.0
    %v1207 = vsel %vm991, %v960, 0.0
    %v1208 = vadd.f32 %v1206, %v1207
    %v1209 = vsel %vm989, %v961, 0.0
    %v1210 = vadd.f32 %v1208, %v1209
    %v1211 = vsel %vm991, %v962, 0.0
    %v1212 = vadd.f32 %v1210, %v1211
    %1213 = vadd.xlane.f32.xlu0 %v1212
    %v1214 = vpop.xlane.xlu0 %1213
    %v1215 = vrot.slane %v1214, 4
    %v1216 = vadd.f32 %v1214, %v1215
    %v1217 = vrot.slane %v1216, 2
    %v1218 = vadd.f32 %v1216, %v1217
    %v1219 = vrot.slane %v1218, 1
    %v1220 = vadd.f32 %v1218, %v1219
    %s1221 = vtos %v1220
    %v1222 = vmul.f32 %v959, %v959
    %v1223 = vmul.f32 %v960, %v960
    %v1224 = vmul.f32 %v961, %v961
    %v1225 = vmul.f32 %v962, %v962
    %v1226 = vsel %vm989, %v1222, 0.0
    %v1227 = vsel %vm991, %v1223, 0.0
    %v1228 = vadd.f32 %v1226, %v1227
    %v1229 = vsel %vm989, %v1224, 0.0
    %v1230 = vadd.f32 %v1228, %v1229
    %v1231 = vsel %vm991, %v1225, 0.0
    %v1232 = vadd.f32 %v1230, %v1231
    %1233 = vadd.xlane.f32.xlu0 %v1232
    %v1234 = vpop.xlane.xlu0 %1233
    %v1235 = vrot.slane %v1234, 4
    %v1236 = vadd.f32 %v1234, %v1235
    %v1237 = vrot.slane %v1236, 2
    %v1238 = vadd.f32 %v1236, %v1237
    %v1239 = vrot.slane %v1238, 1
    %v1240 = vadd.f32 %v1238, %v1239
    %s1241 = vtos %v1240
    %v1242 = vrcp.pop 392.0
    %s1243 = vtos %v1242
    %s1244 = smul.f32 %s1221, %s1243
    %v1245 = vrcp.pop 392.0
    %s1246 = vtos %v1245
    %s1247 = smul.f32 %s1241, %s1246
    %s1248 = smul.f32 %s1244, %s1244
    %s1249 = ssub.f32 %s1247, %s1248
    %s1250 = sld [smem:[#allocation6 + $0x3]]
    %s1251 = sadd.f32 %s1249, 1e-05
    %v1252 = vstv %s1251
    %v1253 = vrsqrt.pop %v1252
    %s1254 = vtos %v1253
    %s1255 = smul.f32 %s1250, %s1254
    %s1256 = sld [smem:[#allocation8 + $0x3]]
    %s1257 = smul.f32 %s1244, %s1255
    %s1258 = ssub.f32 %s1256, %s1257
    %v1259 = vstv %s1255
    %v1260 = vmul.f32 %v959, %v1259
    %v1261 = vmul.f32 %v960, %v1259
    %v1262 = vmul.f32 %v961, %v1259
    %v1263 = vmul.f32 %v962, %v1259
    %v1264 = vstv %s1258
    %v1265 = vadd.f32 %v1260, %v1264
    %v1266 = vadd.f32 %v1261, %v1264
    %v1267 = vadd.f32 %v1262, %v1264
    %v1268 = vadd.f32 %v1263, %v1264
    %v1269 = vmax.f32 %v1265, 0.0
    %v1270 = vmax.f32 %v1266, 0.0
    %v1271 = vmax.f32 %v1267, 0.0
    %v1272 = vmax.f32 %v1268, 0.0
    %s1273 = scalar_lea.vmem %s4, 48
    %1274 = vst.msk [vmem:[%s1273] sm:$0xff] %vm989, %v1269
    %1275 = vst.msk [vmem:[%s1273 + $0x8] sm:$0x3f] %vm991, %v1270
    %1276 = vst.msk [vmem:[%s1273 + $0x50] sm:$0xff] %vm989, %v1271
    %1277 = vst.msk [vmem:[%s1273 + $0x58] sm:$0x3f] %vm991, %v1272
    %v1278 = vsel %vm989, %v985, 0.0
    %v1279 = vsel %vm991, %v986, 0.0
    %v1280 = vadd.f32 %v1278, %v1279
    %v1281 = vsel %vm989, %v987, 0.0
    %v1282 = vadd.f32 %v1280, %v1281
    %v1283 = vsel %vm991, %v988, 0.0
    %v1284 = vadd.f32 %v1282, %v1283
    %1285 = vadd.xlane.f32.xlu0 %v1284
    %v1286 = vpop.xlane.xlu0 %1285
    %v1287 = vrot.slane %v1286, 4
    %v1288 = vadd.f32 %v1286, %v1287
    %v1289 = vrot.slane %v1288, 2
    %v1290 = vadd.f32 %v1288, %v1289
    %v1291 = vrot.slane %v1290, 1
    %v1292 = vadd.f32 %v1290, %v1291
    %s1293 = vtos %v1292
    %v1294 = vmul.f32 %v985, %v985
    %v1295 = vmul.f32 %v986, %v986
    %v1296 = vmul.f32 %v987, %v987
    %v1297 = vmul.f32 %v988, %v988
    %v1298 = vsel %vm989, %v1294, 0.0
    %v1299 = vsel %vm991, %v1295, 0.0
    %v1300 = vadd.f32 %v1298, %v1299
    %v1301 = vsel %vm989, %v1296, 0.0
    %v1302 = vadd.f32 %v1300, %v1301
    %v1303 = vsel %vm991, %v1297, 0.0
    %v1304 = vadd.f32 %v1302, %v1303
    %1305 = vadd.xlane.f32.xlu0 %v1304
    %v1306 = vpop.xlane.xlu0 %1305
    %v1307 = vrot.slane %v1306, 4
    %v1308 = vadd.f32 %v1306, %v1307
    %v1309 = vrot.slane %v1308, 2
    %v1310 = vadd.f32 %v1308, %v1309
    %v1311 = vrot.slane %v1310, 1
    %v1312 = vadd.f32 %v1310, %v1311
    %s1313 = vtos %v1312
    %v1314 = vrcp.pop 392.0
    %s1315 = vtos %v1314
    %s1316 = smul.f32 %s1293, %s1315
    %v1317 = vrcp.pop 392.0
    %s1318 = vtos %v1317
    %s1319 = smul.f32 %s1313, %s1318
    %s1320 = smul.f32 %s1316, %s1316
    %s1321 = ssub.f32 %s1319, %s1320
    %s1322 = sld [smem:[#allocation6 + $0x4]]
    %s1323 = sadd.f32 %s1321, 1e-05
    %v1324 = vstv %s1323
    %v1325 = vrsqrt.pop %v1324
    %s1326 = vtos %v1325
    %s1327 = smul.f32 %s1322, %s1326
    %s1328 = sld [smem:[#allocation8 + $0x4]]
    %s1329 = smul.f32 %s1316, %s1327
    %s1330 = ssub.f32 %s1328, %s1329
    %v1331 = vstv %s1327
    %v1332 = vmul.f32 %v985, %v1331
    %v1333 = vmul.f32 %v986, %v1331
    %v1334 = vmul.f32 %v987, %v1331
    %v1335 = vmul.f32 %v988, %v1331
    %v1336 = vstv %s1330
    %v1337 = vadd.f32 %v1332, %v1336
    %v1338 = vadd.f32 %v1333, %v1336
    %v1339 = vadd.f32 %v1334, %v1336
    %v1340 = vadd.f32 %v1335, %v1336
    %v1341 = vmax.f32 %v1337, 0.0
    %v1342 = vmax.f32 %v1338, 0.0
    %v1343 = vmax.f32 %v1339, 0.0
    %v1344 = vmax.f32 %v1340, 0.0
    %s1345 = scalar_lea.vmem %s4, 64
    %1346 = vst.msk [vmem:[%s1345] sm:$0xff] %vm989, %v1341
    %1347 = vst.msk [vmem:[%s1345 + $0x8] sm:$0x3f] %vm991, %v1342
    %1348 = vst.msk [vmem:[%s1345 + $0x50] sm:$0xff] %vm989, %v1343
    %1349 = vst.msk [vmem:[%s1345 + $0x58] sm:$0x3f] %vm991, %v1344
    // Predicated region
    $region34: #{tpu_custom_call.1} parent=1 // pred_check
      _
    $region35: #{tpu_custom_call.1} parent=1 // pred_check_branch
      %1351 = sbr.rel (0) target = $region37
    $region36: #{tpu_custom_call.1} parent=1 // pred_region
      _
    $region37: #{tpu_custom_call.1} parent=1 // pred_fallthru
      _
    // Predicated region
    $region38: #{tpu_custom_call.1} parent=1 // pred_check
      _
    $region39: #{tpu_custom_call.1} parent=1 // pred_check_branch
      %1353 = sbr.rel (0) target = $region41
    $region40: #{tpu_custom_call.1} parent=1 // pred_region
      _
    $region41: #{tpu_custom_call.1} parent=1 // pred_fallthru
      _
    %1354 = vsyncpa [#allocation3], 1
    %1355 = vsyncpa [#allocation4], 1
    %1356 = vsyncpa [#allocation7], 1

</llo_original>
